<compile_context>
chip_gen: v5e
topology: v5e:2x2
jax: 0.10.0
libtpu: 0.0.40
codegen_flags: <defaults>
</compile_context>

<pallas_src>
import functools

import jax
import jax.numpy as jnp
from jax.experimental import pallas as pl
from jax.experimental.pallas import tpu as pltpu


def _acn_kernel(wc_ref, bc_ref, xpad_ref, w2_ref, b2_ref, out_ref, *,
                C, H, W, ph, pw):
    """One batch tile (TB images) per grid step.

    wc_ref  : SMEM (C*9,)         flattened conv weight [c, kh, kw]
    bc_ref  : SMEM (C,)           conv bias
    xpad_ref: VMEM (TB, H+2, W+2) zero-padded single-channel images
    w2_ref  : VMEM (C*ph*pw, Op)  linear weight (transposed, O padded to Op)
    b2_ref  : VMEM (1, Op)        linear bias (padded)
    out_ref : VMEM (1, TB, Op)    output rows for this batch tile
    """
    xp = xpad_ref[...]                                   # (TB, H+2, W+2) f32

    # 3x3 shifted windows, hoisted out of the channel loop: 9 slice
    # materializations per block instead of 9*C.
    wins = [xp[:, kh:kh + H, kw:kw + W]
            for kh in range(3) for kw in range(3)]       # 9 x (TB, H, W)

    # Static pooling-region boundaries (PyTorch AdaptiveMaxPool2d formula;
    # also correct when H % ph != 0 or W % pw != 0).
    hb = [((i * H) // ph, -((-(i + 1) * H) // ph)) for i in range(ph)]
    wb = [((j * W) // pw, -((-(j + 1) * W) // pw)) for j in range(pw)]

    feats = []                                           # (TB, 1) pieces
    # NOTE: C is tiny here; for large C switch this Python unroll to
    # lax.fori_loop(..., unroll=True) to bound trace size / live ranges.
    for c in range(C):
        # 3x3 'same' conv for output channel c: 9 scalar-broadcast FMAs.
        acc = wc_ref[c * 9] * wins[0]
        for t in range(1, 9):
            acc = acc + wc_ref[c * 9 + t] * wins[t]
        acc = jnp.maximum(acc + bc_ref[c], 0.0)          # bias + ReLU (TB,H,W)

        # Adaptive max pool: one sublane reduce per row-band, then one small
        # lane reduce per cell.
        for (h0, h1) in hb:
            band = jnp.max(acc[:, h0:h1, :], axis=1)     # (TB, W)
            for (w0, w1) in wb:
                feats.append(jnp.max(band[:, w0:w1], axis=1, keepdims=True))

    # Feature order matches torch.flatten of (B, C, ph, pw).
    feat = jnp.concatenate(feats, axis=1)                # (TB, C*ph*pw)

    # Pool + flatten + linear fused into one MXU matmul; Op is a multiple of
    # 128 so the store below is an unmasked, lane-dense vst of all TB rows.
    out = jnp.dot(feat, w2_ref[...], preferred_element_type=jnp.float32)
    out_ref[...] = (out + b2_ref[...])[None]             # (1, TB, Op)


def acn_forward(x, conv_w, conv_b, lin_w, lin_b, pooling_size, *,
                batch_tile=None):
    """x: (B, 1, H, W) float32 (PyTorch NCHW). Returns (B, O)."""
    B, cin, H, W = x.shape
    assert cin == 1, "ACN conv expects a single input channel"
    C = conv_w.shape[0]
    ph, pw = pooling_size
    O = lin_w.shape[0]
    F = C * ph * pw
    Op = ((O + 127) // 128) * 128        # pad O to 128 lanes (lane-dense out)
    Hp, Wp = H + 2, W + 2

    if batch_tile is None:
        # Amortize per-step overhead with a batch tile, but keep >= 2 grid
        # steps whenever B allows so the "parallel" batch axis can be sharded
        # across both v7x TensorCores.
        TB = max(1, min(8, B // 2)) if B >= 2 else 1
    else:
        TB = max(1, batch_tile)
    n_tiles = -(-B // TB)
    Bp = n_tiles * TB

    x2 = x[:, 0].astype(jnp.float32)                     # (B, H, W)
    if Bp != B:
        x2 = jnp.pad(x2, ((0, Bp - B), (0, 0), (0, 0)))
    # The 1-pixel 'same' zero border is materialized by XLA here (one extra
    # HBM pass over the input); acceptable for this memory-light kernel.
    xpad = jnp.pad(x2, ((0, 0), (1, 1), (1, 1)))         # (Bp, Hp, Wp)

    wc = conv_w.reshape(C * 9).astype(jnp.float32)       # (C*9,) SMEM scalars
    bc = conv_b.astype(jnp.float32)                      # (C,)
    # torch Linear: y = feat @ W.T + b, W: (O, F). Pad O -> Op with zeros.
    w2 = jnp.pad(lin_w.T.astype(jnp.float32), ((0, 0), (0, Op - O)))  # (F, Op)
    b2 = jnp.pad(lin_b.astype(jnp.float32), (0, Op - O)).reshape(1, Op)

    kernel = functools.partial(_acn_kernel, C=C, H=H, W=W, ph=ph, pw=pw)

    out = pl.pallas_call(
        kernel,
        grid=(n_tiles,),
        in_specs=[
            pl.BlockSpec(memory_space=pltpu.MemorySpace.SMEM),   # conv weight
            pl.BlockSpec(memory_space=pltpu.MemorySpace.SMEM),   # conv bias
            pl.BlockSpec((TB, Hp, Wp), lambda b: (b, 0, 0)),     # image tile
            pl.BlockSpec((F, Op), lambda b: (0, 0)),             # linear W^T
            pl.BlockSpec((1, Op), lambda b: (0, 0)),             # linear bias
        ],
        out_specs=pl.BlockSpec((1, TB, Op), lambda b: (b, 0, 0)),
        out_shape=jax.ShapeDtypeStruct((n_tiles, TB, Op), jnp.float32),
        compiler_params=pltpu.CompilerParams(
            dimension_semantics=("parallel",)),
    )(wc, bc, xpad, w2, b2)

    return out.reshape(Bp, Op)[:B, :O]


def _reference(x, conv_w, conv_b, lin_w, lin_b, pooling_size):
    """Plain-JAX reference (valid for H, W divisible by pooling_size)."""
    y = jax.lax.conv_general_dilated(
        x, conv_w, window_strides=(1, 1), padding='SAME',
        dimension_numbers=('NCHW', 'OIHW', 'NCHW'))
    y = jnp.maximum(y + conv_b[None, :, None, None], 0.0)
    B, C, H, W = y.shape
    ph, pw = pooling_size
    y = y.reshape(B, C, ph, H // ph, pw, W // pw).max(axis=(3, 5))
    y = y.reshape(B, -1)
    return y @ lin_w.T + lin_b


if __name__ == "__main__":
    # Small deterministic config: B=2, n_channels=4, H=W=16,
    # pooling_size=(4, 4), output_size=8.
    B, H, W = 2, 16, 16
    C = 4
    pooling_size = (4, 4)
    O = 8
    F = C * pooling_size[0] * pooling_size[1]

    key = jax.random.PRNGKey(0)
    k1, k2, k3, k4, k5 = jax.random.split(key, 5)
    conv_w = 0.3 * jax.random.normal(k1, (C, 1, 3, 3), jnp.float32)
    conv_b = 0.1 * jax.random.normal(k2, (C,), jnp.float32)
    lin_w = 0.1 * jax.random.normal(k3, (O, F), jnp.float32)
    lin_b = 0.1 * jax.random.normal(k4, (O,), jnp.float32)
    x = jax.random.normal(k5, (B, 1, H, W), jnp.float32)

    out = acn_forward(x, conv_w, conv_b, lin_w, lin_b, pooling_size)
    out = jax.block_until_ready(out)

    ref = _reference(x, conv_w, conv_b, lin_w, lin_b, pooling_size)
    assert out.shape == (B, O)
    assert jnp.allclose(out, ref, rtol=1e-4, atol=1e-4), (out, ref)
    print("KERNEL_OK")
</pallas_src>

<mosaic_0001>
module attributes {stable_mosaic.version = 11 : i64} {
  func.func @_acn_kernel(%arg0: i32, %arg1: memref<36xf32, #tpu.memory_space<smem>>, %arg2: memref<4xf32, #tpu.memory_space<smem>>, %arg3: memref<1x18x18xf32, #tpu.memory_space<vmem>>, %arg4: memref<64x128xf32, #tpu.memory_space<vmem>>, %arg5: memref<1x128xf32, #tpu.memory_space<vmem>>, %arg6: memref<1x1x128xf32, #tpu.memory_space<vmem>>) attributes {dimension_semantics = [#tpu.dimension_semantics<parallel>], iteration_bounds = array<i64: 2>, scalar_prefetch = 0 : i64, scratch_operands = 0 : i64, tpu.core_type = #tpu.core_type<tc>, window_params = [{transform_indices = @transform_0, window_bounds = array<i64: 36>}, {transform_indices = @transform_1, window_bounds = array<i64: 4>}, {transform_indices = @transform_2, window_bounds = array<i64: 1, 18, 18>}, {pipeline_mode = #tpu.pipeline_mode<synchronous>, transform_indices = @transform_3, window_bounds = array<i64: 64, 128>}, {pipeline_mode = #tpu.pipeline_mode<synchronous>, transform_indices = @transform_4, window_bounds = array<i64: 1, 128>}, {transform_indices = @transform_5, window_bounds = array<i64: 1, 1, 128>}]} {
    %c0 = arith.constant 0 : index
    %c0_0 = arith.constant 0 : index
    %c0_1 = arith.constant 0 : index
    %0 = vector.load %arg3[%c0, %c0_0, %c0_1] : memref<1x18x18xf32, #tpu.memory_space<vmem>>, vector<1x18x18xf32>
    %1 = vector.extract_strided_slice %0 {offsets = [0, 0, 0], sizes = [1, 16, 16], strides = [1, 1, 1]} : vector<1x18x18xf32> to vector<1x16x16xf32>
    %2 = vector.extract_strided_slice %0 {offsets = [0, 0, 1], sizes = [1, 16, 16], strides = [1, 1, 1]} : vector<1x18x18xf32> to vector<1x16x16xf32>
    %3 = vector.extract_strided_slice %0 {offsets = [0, 0, 2], sizes = [1, 16, 16], strides = [1, 1, 1]} : vector<1x18x18xf32> to vector<1x16x16xf32>
    %4 = vector.extract_strided_slice %0 {offsets = [0, 1, 0], sizes = [1, 16, 16], strides = [1, 1, 1]} : vector<1x18x18xf32> to vector<1x16x16xf32>
    %5 = vector.extract_strided_slice %0 {offsets = [0, 1, 1], sizes = [1, 16, 16], strides = [1, 1, 1]} : vector<1x18x18xf32> to vector<1x16x16xf32>
    %6 = vector.extract_strided_slice %0 {offsets = [0, 1, 2], sizes = [1, 16, 16], strides = [1, 1, 1]} : vector<1x18x18xf32> to vector<1x16x16xf32>
    %7 = vector.extract_strided_slice %0 {offsets = [0, 2, 0], sizes = [1, 16, 16], strides = [1, 1, 1]} : vector<1x18x18xf32> to vector<1x16x16xf32>
    %8 = vector.extract_strided_slice %0 {offsets = [0, 2, 1], sizes = [1, 16, 16], strides = [1, 1, 1]} : vector<1x18x18xf32> to vector<1x16x16xf32>
    %9 = vector.extract_strided_slice %0 {offsets = [0, 2, 2], sizes = [1, 16, 16], strides = [1, 1, 1]} : vector<1x18x18xf32> to vector<1x16x16xf32>
    %c0_2 = arith.constant 0 : index
    %10 = memref.load %arg1[%c0_2] : memref<36xf32, #tpu.memory_space<smem>>
    %11 = vector.broadcast %10 : f32 to vector<1x16x16xf32>
    %12 = arith.mulf %11, %1 : vector<1x16x16xf32>
    %c1 = arith.constant 1 : index
    %13 = memref.load %arg1[%c1] : memref<36xf32, #tpu.memory_space<smem>>
    %14 = vector.broadcast %13 : f32 to vector<1x16x16xf32>
    %15 = arith.mulf %14, %2 : vector<1x16x16xf32>
    %16 = arith.addf %12, %15 : vector<1x16x16xf32>
    %c2 = arith.constant 2 : index
    %17 = memref.load %arg1[%c2] : memref<36xf32, #tpu.memory_space<smem>>
    %18 = vector.broadcast %17 : f32 to vector<1x16x16xf32>
    %19 = arith.mulf %18, %3 : vector<1x16x16xf32>
    %20 = arith.addf %16, %19 : vector<1x16x16xf32>
    %c3 = arith.constant 3 : index
    %21 = memref.load %arg1[%c3] : memref<36xf32, #tpu.memory_space<smem>>
    %22 = vector.broadcast %21 : f32 to vector<1x16x16xf32>
    %23 = arith.mulf %22, %4 : vector<1x16x16xf32>
    %24 = arith.addf %20, %23 : vector<1x16x16xf32>
    %c4 = arith.constant 4 : index
    %25 = memref.load %arg1[%c4] : memref<36xf32, #tpu.memory_space<smem>>
    %26 = vector.broadcast %25 : f32 to vector<1x16x16xf32>
    %27 = arith.mulf %26, %5 : vector<1x16x16xf32>
    %28 = arith.addf %24, %27 : vector<1x16x16xf32>
    %c5 = arith.constant 5 : index
    %29 = memref.load %arg1[%c5] : memref<36xf32, #tpu.memory_space<smem>>
    %30 = vector.broadcast %29 : f32 to vector<1x16x16xf32>
    %31 = arith.mulf %30, %6 : vector<1x16x16xf32>
    %32 = arith.addf %28, %31 : vector<1x16x16xf32>
    %c6 = arith.constant 6 : index
    %33 = memref.load %arg1[%c6] : memref<36xf32, #tpu.memory_space<smem>>
    %34 = vector.broadcast %33 : f32 to vector<1x16x16xf32>
    %35 = arith.mulf %34, %7 : vector<1x16x16xf32>
    %36 = arith.addf %32, %35 : vector<1x16x16xf32>
    %c7 = arith.constant 7 : index
    %37 = memref.load %arg1[%c7] : memref<36xf32, #tpu.memory_space<smem>>
    %38 = vector.broadcast %37 : f32 to vector<1x16x16xf32>
    %39 = arith.mulf %38, %8 : vector<1x16x16xf32>
    %40 = arith.addf %36, %39 : vector<1x16x16xf32>
    %c8 = arith.constant 8 : index
    %41 = memref.load %arg1[%c8] : memref<36xf32, #tpu.memory_space<smem>>
    %42 = vector.broadcast %41 : f32 to vector<1x16x16xf32>
    %43 = arith.mulf %42, %9 : vector<1x16x16xf32>
    %44 = arith.addf %40, %43 : vector<1x16x16xf32>
    %c0_3 = arith.constant 0 : index
    %45 = memref.load %arg2[%c0_3] : memref<4xf32, #tpu.memory_space<smem>>
    %46 = vector.broadcast %45 : f32 to vector<1x16x16xf32>
    %47 = arith.addf %44, %46 : vector<1x16x16xf32>
    %cst = arith.constant 0.000000e+00 : f32
    %48 = vector.broadcast %cst : f32 to vector<1x16x16xf32>
    %49 = arith.maximumf %47, %48 : vector<1x16x16xf32>
    %50 = vector.extract_strided_slice %49 {offsets = [0, 0, 0], sizes = [1, 4, 16], strides = [1, 1, 1]} : vector<1x16x16xf32> to vector<1x4x16xf32>
    %cst_4 = arith.constant dense<0xFF800000> : vector<1x16xf32>
    %51 = vector.multi_reduction <maximumf>, %50, %cst_4 [1] : vector<1x4x16xf32> to vector<1x16xf32>
    %52 = vector.extract_strided_slice %51 {offsets = [0, 0], sizes = [1, 4], strides = [1, 1]} : vector<1x16xf32> to vector<1x4xf32>
    %cst_5 = arith.constant dense<0xFF800000> : vector<1xf32>
    %53 = vector.multi_reduction <maximumf>, %52, %cst_5 [1] : vector<1x4xf32> to vector<1xf32>
    %54 = vector.shape_cast %53 : vector<1xf32> to vector<1x1xf32>
    %55 = vector.extract_strided_slice %51 {offsets = [0, 4], sizes = [1, 4], strides = [1, 1]} : vector<1x16xf32> to vector<1x4xf32>
    %cst_6 = arith.constant dense<0xFF800000> : vector<1xf32>
    %56 = vector.multi_reduction <maximumf>, %55, %cst_6 [1] : vector<1x4xf32> to vector<1xf32>
    %57 = vector.shape_cast %56 : vector<1xf32> to vector<1x1xf32>
    %58 = vector.extract_strided_slice %51 {offsets = [0, 8], sizes = [1, 4], strides = [1, 1]} : vector<1x16xf32> to vector<1x4xf32>
    %cst_7 = arith.constant dense<0xFF800000> : vector<1xf32>
    %59 = vector.multi_reduction <maximumf>, %58, %cst_7 [1] : vector<1x4xf32> to vector<1xf32>
    %60 = vector.shape_cast %59 : vector<1xf32> to vector<1x1xf32>
    %61 = vector.extract_strided_slice %51 {offsets = [0, 12], sizes = [1, 4], strides = [1, 1]} : vector<1x16xf32> to vector<1x4xf32>
    %cst_8 = arith.constant dense<0xFF800000> : vector<1xf32>
    %62 = vector.multi_reduction <maximumf>, %61, %cst_8 [1] : vector<1x4xf32> to vector<1xf32>
    %63 = vector.shape_cast %62 : vector<1xf32> to vector<1x1xf32>
    %64 = vector.extract_strided_slice %49 {offsets = [0, 4, 0], sizes = [1, 4, 16], strides = [1, 1, 1]} : vector<1x16x16xf32> to vector<1x4x16xf32>
    %cst_9 = arith.constant dense<0xFF800000> : vector<1x16xf32>
    %65 = vector.multi_reduction <maximumf>, %64, %cst_9 [1] : vector<1x4x16xf32> to vector<1x16xf32>
    %66 = vector.extract_strided_slice %65 {offsets = [0, 0], sizes = [1, 4], strides = [1, 1]} : vector<1x16xf32> to vector<1x4xf32>
    %cst_10 = arith.constant dense<0xFF800000> : vector<1xf32>
    %67 = vector.multi_reduction <maximumf>, %66, %cst_10 [1] : vector<1x4xf32> to vector<1xf32>
    %68 = vector.shape_cast %67 : vector<1xf32> to vector<1x1xf32>
    %69 = vector.extract_strided_slice %65 {offsets = [0, 4], sizes = [1, 4], strides = [1, 1]} : vector<1x16xf32> to vector<1x4xf32>
    %cst_11 = arith.constant dense<0xFF800000> : vector<1xf32>
    %70 = vector.multi_reduction <maximumf>, %69, %cst_11 [1] : vector<1x4xf32> to vector<1xf32>
    %71 = vector.shape_cast %70 : vector<1xf32> to vector<1x1xf32>
    %72 = vector.extract_strided_slice %65 {offsets = [0, 8], sizes = [1, 4], strides = [1, 1]} : vector<1x16xf32> to vector<1x4xf32>
    %cst_12 = arith.constant dense<0xFF800000> : vector<1xf32>
    %73 = vector.multi_reduction <maximumf>, %72, %cst_12 [1] : vector<1x4xf32> to vector<1xf32>
    %74 = vector.shape_cast %73 : vector<1xf32> to vector<1x1xf32>
    %75 = vector.extract_strided_slice %65 {offsets = [0, 12], sizes = [1, 4], strides = [1, 1]} : vector<1x16xf32> to vector<1x4xf32>
    %cst_13 = arith.constant dense<0xFF800000> : vector<1xf32>
    %76 = vector.multi_reduction <maximumf>, %75, %cst_13 [1] : vector<1x4xf32> to vector<1xf32>
    %77 = vector.shape_cast %76 : vector<1xf32> to vector<1x1xf32>
    %78 = vector.extract_strided_slice %49 {offsets = [0, 8, 0], sizes = [1, 4, 16], strides = [1, 1, 1]} : vector<1x16x16xf32> to vector<1x4x16xf32>
    %cst_14 = arith.constant dense<0xFF800000> : vector<1x16xf32>
    %79 = vector.multi_reduction <maximumf>, %78, %cst_14 [1] : vector<1x4x16xf32> to vector<1x16xf32>
    %80 = vector.extract_strided_slice %79 {offsets = [0, 0], sizes = [1, 4], strides = [1, 1]} : vector<1x16xf32> to vector<1x4xf32>
    %cst_15 = arith.constant dense<0xFF800000> : vector<1xf32>
    %81 = vector.multi_reduction <maximumf>, %80, %cst_15 [1] : vector<1x4xf32> to vector<1xf32>
    %82 = vector.shape_cast %81 : vector<1xf32> to vector<1x1xf32>
    %83 = vector.extract_strided_slice %79 {offsets = [0, 4], sizes = [1, 4], strides = [1, 1]} : vector<1x16xf32> to vector<1x4xf32>
    %cst_16 = arith.constant dense<0xFF800000> : vector<1xf32>
    %84 = vector.multi_reduction <maximumf>, %83, %cst_16 [1] : vector<1x4xf32> to vector<1xf32>
    %85 = vector.shape_cast %84 : vector<1xf32> to vector<1x1xf32>
    %86 = vector.extract_strided_slice %79 {offsets = [0, 8], sizes = [1, 4], strides = [1, 1]} : vector<1x16xf32> to vector<1x4xf32>
    %cst_17 = arith.constant dense<0xFF800000> : vector<1xf32>
    %87 = vector.multi_reduction <maximumf>, %86, %cst_17 [1] : vector<1x4xf32> to vector<1xf32>
    %88 = vector.shape_cast %87 : vector<1xf32> to vector<1x1xf32>
    %89 = vector.extract_strided_slice %79 {offsets = [0, 12], sizes = [1, 4], strides = [1, 1]} : vector<1x16xf32> to vector<1x4xf32>
    %cst_18 = arith.constant dense<0xFF800000> : vector<1xf32>
    %90 = vector.multi_reduction <maximumf>, %89, %cst_18 [1] : vector<1x4xf32> to vector<1xf32>
    %91 = vector.shape_cast %90 : vector<1xf32> to vector<1x1xf32>
    %92 = vector.extract_strided_slice %49 {offsets = [0, 12, 0], sizes = [1, 4, 16], strides = [1, 1, 1]} : vector<1x16x16xf32> to vector<1x4x16xf32>
    %cst_19 = arith.constant dense<0xFF800000> : vector<1x16xf32>
    %93 = vector.multi_reduction <maximumf>, %92, %cst_19 [1] : vector<1x4x16xf32> to vector<1x16xf32>
    %94 = vector.extract_strided_slice %93 {offsets = [0, 0], sizes = [1, 4], strides = [1, 1]} : vector<1x16xf32> to vector<1x4xf32>
    %cst_20 = arith.constant dense<0xFF800000> : vector<1xf32>
    %95 = vector.multi_reduction <maximumf>, %94, %cst_20 [1] : vector<1x4xf32> to vector<1xf32>
    %96 = vector.shape_cast %95 : vector<1xf32> to vector<1x1xf32>
    %97 = vector.extract_strided_slice %93 {offsets = [0, 4], sizes = [1, 4], strides = [1, 1]} : vector<1x16xf32> to vector<1x4xf32>
    %cst_21 = arith.constant dense<0xFF800000> : vector<1xf32>
    %98 = vector.multi_reduction <maximumf>, %97, %cst_21 [1] : vector<1x4xf32> to vector<1xf32>
    %99 = vector.shape_cast %98 : vector<1xf32> to vector<1x1xf32>
    %100 = vector.extract_strided_slice %93 {offsets = [0, 8], sizes = [1, 4], strides = [1, 1]} : vector<1x16xf32> to vector<1x4xf32>
    %cst_22 = arith.constant dense<0xFF800000> : vector<1xf32>
    %101 = vector.multi_reduction <maximumf>, %100, %cst_22 [1] : vector<1x4xf32> to vector<1xf32>
    %102 = vector.shape_cast %101 : vector<1xf32> to vector<1x1xf32>
    %103 = vector.extract_strided_slice %93 {offsets = [0, 12], sizes = [1, 4], strides = [1, 1]} : vector<1x16xf32> to vector<1x4xf32>
    %cst_23 = arith.constant dense<0xFF800000> : vector<1xf32>
    %104 = vector.multi_reduction <maximumf>, %103, %cst_23 [1] : vector<1x4xf32> to vector<1xf32>
    %105 = vector.shape_cast %104 : vector<1xf32> to vector<1x1xf32>
    %c9 = arith.constant 9 : index
    %106 = memref.load %arg1[%c9] : memref<36xf32, #tpu.memory_space<smem>>
    %107 = vector.broadcast %106 : f32 to vector<1x16x16xf32>
    %108 = arith.mulf %107, %1 : vector<1x16x16xf32>
    %c10 = arith.constant 10 : index
    %109 = memref.load %arg1[%c10] : memref<36xf32, #tpu.memory_space<smem>>
    %110 = vector.broadcast %109 : f32 to vector<1x16x16xf32>
    %111 = arith.mulf %110, %2 : vector<1x16x16xf32>
    %112 = arith.addf %108, %111 : vector<1x16x16xf32>
    %c11 = arith.constant 11 : index
    %113 = memref.load %arg1[%c11] : memref<36xf32, #tpu.memory_space<smem>>
    %114 = vector.broadcast %113 : f32 to vector<1x16x16xf32>
    %115 = arith.mulf %114, %3 : vector<1x16x16xf32>
    %116 = arith.addf %112, %115 : vector<1x16x16xf32>
    %c12 = arith.constant 12 : index
    %117 = memref.load %arg1[%c12] : memref<36xf32, #tpu.memory_space<smem>>
    %118 = vector.broadcast %117 : f32 to vector<1x16x16xf32>
    %119 = arith.mulf %118, %4 : vector<1x16x16xf32>
    %120 = arith.addf %116, %119 : vector<1x16x16xf32>
    %c13 = arith.constant 13 : index
    %121 = memref.load %arg1[%c13] : memref<36xf32, #tpu.memory_space<smem>>
    %122 = vector.broadcast %121 : f32 to vector<1x16x16xf32>
    %123 = arith.mulf %122, %5 : vector<1x16x16xf32>
    %124 = arith.addf %120, %123 : vector<1x16x16xf32>
    %c14 = arith.constant 14 : index
    %125 = memref.load %arg1[%c14] : memref<36xf32, #tpu.memory_space<smem>>
    %126 = vector.broadcast %125 : f32 to vector<1x16x16xf32>
    %127 = arith.mulf %126, %6 : vector<1x16x16xf32>
    %128 = arith.addf %124, %127 : vector<1x16x16xf32>
    %c15 = arith.constant 15 : index
    %129 = memref.load %arg1[%c15] : memref<36xf32, #tpu.memory_space<smem>>
    %130 = vector.broadcast %129 : f32 to vector<1x16x16xf32>
    %131 = arith.mulf %130, %7 : vector<1x16x16xf32>
    %132 = arith.addf %128, %131 : vector<1x16x16xf32>
    %c16 = arith.constant 16 : index
    %133 = memref.load %arg1[%c16] : memref<36xf32, #tpu.memory_space<smem>>
    %134 = vector.broadcast %133 : f32 to vector<1x16x16xf32>
    %135 = arith.mulf %134, %8 : vector<1x16x16xf32>
    %136 = arith.addf %132, %135 : vector<1x16x16xf32>
    %c17 = arith.constant 17 : index
    %137 = memref.load %arg1[%c17] : memref<36xf32, #tpu.memory_space<smem>>
    %138 = vector.broadcast %137 : f32 to vector<1x16x16xf32>
    %139 = arith.mulf %138, %9 : vector<1x16x16xf32>
    %140 = arith.addf %136, %139 : vector<1x16x16xf32>
    %c1_24 = arith.constant 1 : index
    %141 = memref.load %arg2[%c1_24] : memref<4xf32, #tpu.memory_space<smem>>
    %142 = vector.broadcast %141 : f32 to vector<1x16x16xf32>
    %143 = arith.addf %140, %142 : vector<1x16x16xf32>
    %cst_25 = arith.constant 0.000000e+00 : f32
    %144 = vector.broadcast %cst_25 : f32 to vector<1x16x16xf32>
    %145 = arith.maximumf %143, %144 : vector<1x16x16xf32>
    %146 = vector.extract_strided_slice %145 {offsets = [0, 0, 0], sizes = [1, 4, 16], strides = [1, 1, 1]} : vector<1x16x16xf32> to vector<1x4x16xf32>
    %cst_26 = arith.constant dense<0xFF800000> : vector<1x16xf32>
    %147 = vector.multi_reduction <maximumf>, %146, %cst_26 [1] : vector<1x4x16xf32> to vector<1x16xf32>
    %148 = vector.extract_strided_slice %147 {offsets = [0, 0], sizes = [1, 4], strides = [1, 1]} : vector<1x16xf32> to vector<1x4xf32>
    %cst_27 = arith.constant dense<0xFF800000> : vector<1xf32>
    %149 = vector.multi_reduction <maximumf>, %148, %cst_27 [1] : vector<1x4xf32> to vector<1xf32>
    %150 = vector.shape_cast %149 : vector<1xf32> to vector<1x1xf32>
    %151 = vector.extract_strided_slice %147 {offsets = [0, 4], sizes = [1, 4], strides = [1, 1]} : vector<1x16xf32> to vector<1x4xf32>
    %cst_28 = arith.constant dense<0xFF800000> : vector<1xf32>
    %152 = vector.multi_reduction <maximumf>, %151, %cst_28 [1] : vector<1x4xf32> to vector<1xf32>
    %153 = vector.shape_cast %152 : vector<1xf32> to vector<1x1xf32>
    %154 = vector.extract_strided_slice %147 {offsets = [0, 8], sizes = [1, 4], strides = [1, 1]} : vector<1x16xf32> to vector<1x4xf32>
    %cst_29 = arith.constant dense<0xFF800000> : vector<1xf32>
    %155 = vector.multi_reduction <maximumf>, %154, %cst_29 [1] : vector<1x4xf32> to vector<1xf32>
    %156 = vector.shape_cast %155 : vector<1xf32> to vector<1x1xf32>
    %157 = vector.extract_strided_slice %147 {offsets = [0, 12], sizes = [1, 4], strides = [1, 1]} : vector<1x16xf32> to vector<1x4xf32>
    %cst_30 = arith.constant dense<0xFF800000> : vector<1xf32>
    %158 = vector.multi_reduction <maximumf>, %157, %cst_30 [1] : vector<1x4xf32> to vector<1xf32>
    %159 = vector.shape_cast %158 : vector<1xf32> to vector<1x1xf32>
    %160 = vector.extract_strided_slice %145 {offsets = [0, 4, 0], sizes = [1, 4, 16], strides = [1, 1, 1]} : vector<1x16x16xf32> to vector<1x4x16xf32>
    %cst_31 = arith.constant dense<0xFF800000> : vector<1x16xf32>
    %161 = vector.multi_reduction <maximumf>, %160, %cst_31 [1] : vector<1x4x16xf32> to vector<1x16xf32>
    %162 = vector.extract_strided_slice %161 {offsets = [0, 0], sizes = [1, 4], strides = [1, 1]} : vector<1x16xf32> to vector<1x4xf32>
    %cst_32 = arith.constant dense<0xFF800000> : vector<1xf32>
    %163 = vector.multi_reduction <maximumf>, %162, %cst_32 [1] : vector<1x4xf32> to vector<1xf32>
    %164 = vector.shape_cast %163 : vector<1xf32> to vector<1x1xf32>
    %165 = vector.extract_strided_slice %161 {offsets = [0, 4], sizes = [1, 4], strides = [1, 1]} : vector<1x16xf32> to vector<1x4xf32>
    %cst_33 = arith.constant dense<0xFF800000> : vector<1xf32>
    %166 = vector.multi_reduction <maximumf>, %165, %cst_33 [1] : vector<1x4xf32> to vector<1xf32>
    %167 = vector.shape_cast %166 : vector<1xf32> to vector<1x1xf32>
    %168 = vector.extract_strided_slice %161 {offsets = [0, 8], sizes = [1, 4], strides = [1, 1]} : vector<1x16xf32> to vector<1x4xf32>
    %cst_34 = arith.constant dense<0xFF800000> : vector<1xf32>
    %169 = vector.multi_reduction <maximumf>, %168, %cst_34 [1] : vector<1x4xf32> to vector<1xf32>
    %170 = vector.shape_cast %169 : vector<1xf32> to vector<1x1xf32>
    %171 = vector.extract_strided_slice %161 {offsets = [0, 12], sizes = [1, 4], strides = [1, 1]} : vector<1x16xf32> to vector<1x4xf32>
    %cst_35 = arith.constant dense<0xFF800000> : vector<1xf32>
    %172 = vector.multi_reduction <maximumf>, %171, %cst_35 [1] : vector<1x4xf32> to vector<1xf32>
    %173 = vector.shape_cast %172 : vector<1xf32> to vector<1x1xf32>
    %174 = vector.extract_strided_slice %145 {offsets = [0, 8, 0], sizes = [1, 4, 16], strides = [1, 1, 1]} : vector<1x16x16xf32> to vector<1x4x16xf32>
    %cst_36 = arith.constant dense<0xFF800000> : vector<1x16xf32>
    %175 = vector.multi_reduction <maximumf>, %174, %cst_36 [1] : vector<1x4x16xf32> to vector<1x16xf32>
    %176 = vector.extract_strided_slice %175 {offsets = [0, 0], sizes = [1, 4], strides = [1, 1]} : vector<1x16xf32> to vector<1x4xf32>
    %cst_37 = arith.constant dense<0xFF800000> : vector<1xf32>
    %177 = vector.multi_reduction <maximumf>, %176, %cst_37 [1] : vector<1x4xf32> to vector<1xf32>
    %178 = vector.shape_cast %177 : vector<1xf32> to vector<1x1xf32>
    %179 = vector.extract_strided_slice %175 {offsets = [0, 4], sizes = [1, 4], strides = [1, 1]} : vector<1x16xf32> to vector<1x4xf32>
    %cst_38 = arith.constant dense<0xFF800000> : vector<1xf32>
    %180 = vector.multi_reduction <maximumf>, %179, %cst_38 [1] : vector<1x4xf32> to vector<1xf32>
    %181 = vector.shape_cast %180 : vector<1xf32> to vector<1x1xf32>
    %182 = vector.extract_strided_slice %175 {offsets = [0, 8], sizes = [1, 4], strides = [1, 1]} : vector<1x16xf32> to vector<1x4xf32>
    %cst_39 = arith.constant dense<0xFF800000> : vector<1xf32>
    %183 = vector.multi_reduction <maximumf>, %182, %cst_39 [1] : vector<1x4xf32> to vector<1xf32>
    %184 = vector.shape_cast %183 : vector<1xf32> to vector<1x1xf32>
    %185 = vector.extract_strided_slice %175 {offsets = [0, 12], sizes = [1, 4], strides = [1, 1]} : vector<1x16xf32> to vector<1x4xf32>
    %cst_40 = arith.constant dense<0xFF800000> : vector<1xf32>
    %186 = vector.multi_reduction <maximumf>, %185, %cst_40 [1] : vector<1x4xf32> to vector<1xf32>
    %187 = vector.shape_cast %186 : vector<1xf32> to vector<1x1xf32>
    %188 = vector.extract_strided_slice %145 {offsets = [0, 12, 0], sizes = [1, 4, 16], strides = [1, 1, 1]} : vector<1x16x16xf32> to vector<1x4x16xf32>
    %cst_41 = arith.constant dense<0xFF800000> : vector<1x16xf32>
    %189 = vector.multi_reduction <maximumf>, %188, %cst_41 [1] : vector<1x4x16xf32> to vector<1x16xf32>
    %190 = vector.extract_strided_slice %189 {offsets = [0, 0], sizes = [1, 4], strides = [1, 1]} : vector<1x16xf32> to vector<1x4xf32>
    %cst_42 = arith.constant dense<0xFF800000> : vector<1xf32>
    %191 = vector.multi_reduction <maximumf>, %190, %cst_42 [1] : vector<1x4xf32> to vector<1xf32>
    %192 = vector.shape_cast %191 : vector<1xf32> to vector<1x1xf32>
    %193 = vector.extract_strided_slice %189 {offsets = [0, 4], sizes = [1, 4], strides = [1, 1]} : vector<1x16xf32> to vector<1x4xf32>
    %cst_43 = arith.constant dense<0xFF800000> : vector<1xf32>
    %194 = vector.multi_reduction <maximumf>, %193, %cst_43 [1] : vector<1x4xf32> to vector<1xf32>
    %195 = vector.shape_cast %194 : vector<1xf32> to vector<1x1xf32>
    %196 = vector.extract_strided_slice %189 {offsets = [0, 8], sizes = [1, 4], strides = [1, 1]} : vector<1x16xf32> to vector<1x4xf32>
    %cst_44 = arith.constant dense<0xFF800000> : vector<1xf32>
    %197 = vector.multi_reduction <maximumf>, %196, %cst_44 [1] : vector<1x4xf32> to vector<1xf32>
    %198 = vector.shape_cast %197 : vector<1xf32> to vector<1x1xf32>
    %199 = vector.extract_strided_slice %189 {offsets = [0, 12], sizes = [1, 4], strides = [1, 1]} : vector<1x16xf32> to vector<1x4xf32>
    %cst_45 = arith.constant dense<0xFF800000> : vector<1xf32>
    %200 = vector.multi_reduction <maximumf>, %199, %cst_45 [1] : vector<1x4xf32> to vector<1xf32>
    %201 = vector.shape_cast %200 : vector<1xf32> to vector<1x1xf32>
    %c18 = arith.constant 18 : index
    %202 = memref.load %arg1[%c18] : memref<36xf32, #tpu.memory_space<smem>>
    %203 = vector.broadcast %202 : f32 to vector<1x16x16xf32>
    %204 = arith.mulf %203, %1 : vector<1x16x16xf32>
    %c19 = arith.constant 19 : index
    %205 = memref.load %arg1[%c19] : memref<36xf32, #tpu.memory_space<smem>>
    %206 = vector.broadcast %205 : f32 to vector<1x16x16xf32>
    %207 = arith.mulf %206, %2 : vector<1x16x16xf32>
    %208 = arith.addf %204, %207 : vector<1x16x16xf32>
    %c20 = arith.constant 20 : index
    %209 = memref.load %arg1[%c20] : memref<36xf32, #tpu.memory_space<smem>>
    %210 = vector.broadcast %209 : f32 to vector<1x16x16xf32>
    %211 = arith.mulf %210, %3 : vector<1x16x16xf32>
    %212 = arith.addf %208, %211 : vector<1x16x16xf32>
    %c21 = arith.constant 21 : index
    %213 = memref.load %arg1[%c21] : memref<36xf32, #tpu.memory_space<smem>>
    %214 = vector.broadcast %213 : f32 to vector<1x16x16xf32>
    %215 = arith.mulf %214, %4 : vector<1x16x16xf32>
    %216 = arith.addf %212, %215 : vector<1x16x16xf32>
    %c22 = arith.constant 22 : index
    %217 = memref.load %arg1[%c22] : memref<36xf32, #tpu.memory_space<smem>>
    %218 = vector.broadcast %217 : f32 to vector<1x16x16xf32>
    %219 = arith.mulf %218, %5 : vector<1x16x16xf32>
    %220 = arith.addf %216, %219 : vector<1x16x16xf32>
    %c23 = arith.constant 23 : index
    %221 = memref.load %arg1[%c23] : memref<36xf32, #tpu.memory_space<smem>>
    %222 = vector.broadcast %221 : f32 to vector<1x16x16xf32>
    %223 = arith.mulf %222, %6 : vector<1x16x16xf32>
    %224 = arith.addf %220, %223 : vector<1x16x16xf32>
    %c24 = arith.constant 24 : index
    %225 = memref.load %arg1[%c24] : memref<36xf32, #tpu.memory_space<smem>>
    %226 = vector.broadcast %225 : f32 to vector<1x16x16xf32>
    %227 = arith.mulf %226, %7 : vector<1x16x16xf32>
    %228 = arith.addf %224, %227 : vector<1x16x16xf32>
    %c25 = arith.constant 25 : index
    %229 = memref.load %arg1[%c25] : memref<36xf32, #tpu.memory_space<smem>>
    %230 = vector.broadcast %229 : f32 to vector<1x16x16xf32>
    %231 = arith.mulf %230, %8 : vector<1x16x16xf32>
    %232 = arith.addf %228, %231 : vector<1x16x16xf32>
    %c26 = arith.constant 26 : index
    %233 = memref.load %arg1[%c26] : memref<36xf32, #tpu.memory_space<smem>>
    %234 = vector.broadcast %233 : f32 to vector<1x16x16xf32>
    %235 = arith.mulf %234, %9 : vector<1x16x16xf32>
    %236 = arith.addf %232, %235 : vector<1x16x16xf32>
    %c2_46 = arith.constant 2 : index
    %237 = memref.load %arg2[%c2_46] : memref<4xf32, #tpu.memory_space<smem>>
    %238 = vector.broadcast %237 : f32 to vector<1x16x16xf32>
    %239 = arith.addf %236, %238 : vector<1x16x16xf32>
    %cst_47 = arith.constant 0.000000e+00 : f32
    %240 = vector.broadcast %cst_47 : f32 to vector<1x16x16xf32>
    %241 = arith.maximumf %239, %240 : vector<1x16x16xf32>
    %242 = vector.extract_strided_slice %241 {offsets = [0, 0, 0], sizes = [1, 4, 16], strides = [1, 1, 1]} : vector<1x16x16xf32> to vector<1x4x16xf32>
    %cst_48 = arith.constant dense<0xFF800000> : vector<1x16xf32>
    %243 = vector.multi_reduction <maximumf>, %242, %cst_48 [1] : vector<1x4x16xf32> to vector<1x16xf32>
    %244 = vector.extract_strided_slice %243 {offsets = [0, 0], sizes = [1, 4], strides = [1, 1]} : vector<1x16xf32> to vector<1x4xf32>
    %cst_49 = arith.constant dense<0xFF800000> : vector<1xf32>
    %245 = vector.multi_reduction <maximumf>, %244, %cst_49 [1] : vector<1x4xf32> to vector<1xf32>
    %246 = vector.shape_cast %245 : vector<1xf32> to vector<1x1xf32>
    %247 = vector.extract_strided_slice %243 {offsets = [0, 4], sizes = [1, 4], strides = [1, 1]} : vector<1x16xf32> to vector<1x4xf32>
    %cst_50 = arith.constant dense<0xFF800000> : vector<1xf32>
    %248 = vector.multi_reduction <maximumf>, %247, %cst_50 [1] : vector<1x4xf32> to vector<1xf32>
    %249 = vector.shape_cast %248 : vector<1xf32> to vector<1x1xf32>
    %250 = vector.extract_strided_slice %243 {offsets = [0, 8], sizes = [1, 4], strides = [1, 1]} : vector<1x16xf32> to vector<1x4xf32>
    %cst_51 = arith.constant dense<0xFF800000> : vector<1xf32>
    %251 = vector.multi_reduction <maximumf>, %250, %cst_51 [1] : vector<1x4xf32> to vector<1xf32>
    %252 = vector.shape_cast %251 : vector<1xf32> to vector<1x1xf32>
    %253 = vector.extract_strided_slice %243 {offsets = [0, 12], sizes = [1, 4], strides = [1, 1]} : vector<1x16xf32> to vector<1x4xf32>
    %cst_52 = arith.constant dense<0xFF800000> : vector<1xf32>
    %254 = vector.multi_reduction <maximumf>, %253, %cst_52 [1] : vector<1x4xf32> to vector<1xf32>
    %255 = vector.shape_cast %254 : vector<1xf32> to vector<1x1xf32>
    %256 = vector.extract_strided_slice %241 {offsets = [0, 4, 0], sizes = [1, 4, 16], strides = [1, 1, 1]} : vector<1x16x16xf32> to vector<1x4x16xf32>
    %cst_53 = arith.constant dense<0xFF800000> : vector<1x16xf32>
    %257 = vector.multi_reduction <maximumf>, %256, %cst_53 [1] : vector<1x4x16xf32> to vector<1x16xf32>
    %258 = vector.extract_strided_slice %257 {offsets = [0, 0], sizes = [1, 4], strides = [1, 1]} : vector<1x16xf32> to vector<1x4xf32>
    %cst_54 = arith.constant dense<0xFF800000> : vector<1xf32>
    %259 = vector.multi_reduction <maximumf>, %258, %cst_54 [1] : vector<1x4xf32> to vector<1xf32>
    %260 = vector.shape_cast %259 : vector<1xf32> to vector<1x1xf32>
    %261 = vector.extract_strided_slice %257 {offsets = [0, 4], sizes = [1, 4], strides = [1, 1]} : vector<1x16xf32> to vector<1x4xf32>
    %cst_55 = arith.constant dense<0xFF800000> : vector<1xf32>
    %262 = vector.multi_reduction <maximumf>, %261, %cst_55 [1] : vector<1x4xf32> to vector<1xf32>
    %263 = vector.shape_cast %262 : vector<1xf32> to vector<1x1xf32>
    %264 = vector.extract_strided_slice %257 {offsets = [0, 8], sizes = [1, 4], strides = [1, 1]} : vector<1x16xf32> to vector<1x4xf32>
    %cst_56 = arith.constant dense<0xFF800000> : vector<1xf32>
    %265 = vector.multi_reduction <maximumf>, %264, %cst_56 [1] : vector<1x4xf32> to vector<1xf32>
    %266 = vector.shape_cast %265 : vector<1xf32> to vector<1x1xf32>
    %267 = vector.extract_strided_slice %257 {offsets = [0, 12], sizes = [1, 4], strides = [1, 1]} : vector<1x16xf32> to vector<1x4xf32>
    %cst_57 = arith.constant dense<0xFF800000> : vector<1xf32>
    %268 = vector.multi_reduction <maximumf>, %267, %cst_57 [1] : vector<1x4xf32> to vector<1xf32>
    %269 = vector.shape_cast %268 : vector<1xf32> to vector<1x1xf32>
    %270 = vector.extract_strided_slice %241 {offsets = [0, 8, 0], sizes = [1, 4, 16], strides = [1, 1, 1]} : vector<1x16x16xf32> to vector<1x4x16xf32>
    %cst_58 = arith.constant dense<0xFF800000> : vector<1x16xf32>
    %271 = vector.multi_reduction <maximumf>, %270, %cst_58 [1] : vector<1x4x16xf32> to vector<1x16xf32>
    %272 = vector.extract_strided_slice %271 {offsets = [0, 0], sizes = [1, 4], strides = [1, 1]} : vector<1x16xf32> to vector<1x4xf32>
    %cst_59 = arith.constant dense<0xFF800000> : vector<1xf32>
    %273 = vector.multi_reduction <maximumf>, %272, %cst_59 [1] : vector<1x4xf32> to vector<1xf32>
    %274 = vector.shape_cast %273 : vector<1xf32> to vector<1x1xf32>
    %275 = vector.extract_strided_slice %271 {offsets = [0, 4], sizes = [1, 4], strides = [1, 1]} : vector<1x16xf32> to vector<1x4xf32>
    %cst_60 = arith.constant dense<0xFF800000> : vector<1xf32>
    %276 = vector.multi_reduction <maximumf>, %275, %cst_60 [1] : vector<1x4xf32> to vector<1xf32>
    %277 = vector.shape_cast %276 : vector<1xf32> to vector<1x1xf32>
    %278 = vector.extract_strided_slice %271 {offsets = [0, 8], sizes = [1, 4], strides = [1, 1]} : vector<1x16xf32> to vector<1x4xf32>
    %cst_61 = arith.constant dense<0xFF800000> : vector<1xf32>
    %279 = vector.multi_reduction <maximumf>, %278, %cst_61 [1] : vector<1x4xf32> to vector<1xf32>
    %280 = vector.shape_cast %279 : vector<1xf32> to vector<1x1xf32>
    %281 = vector.extract_strided_slice %271 {offsets = [0, 12], sizes = [1, 4], strides = [1, 1]} : vector<1x16xf32> to vector<1x4xf32>
    %cst_62 = arith.constant dense<0xFF800000> : vector<1xf32>
    %282 = vector.multi_reduction <maximumf>, %281, %cst_62 [1] : vector<1x4xf32> to vector<1xf32>
    %283 = vector.shape_cast %282 : vector<1xf32> to vector<1x1xf32>
    %284 = vector.extract_strided_slice %241 {offsets = [0, 12, 0], sizes = [1, 4, 16], strides = [1, 1, 1]} : vector<1x16x16xf32> to vector<1x4x16xf32>
    %cst_63 = arith.constant dense<0xFF800000> : vector<1x16xf32>
    %285 = vector.multi_reduction <maximumf>, %284, %cst_63 [1] : vector<1x4x16xf32> to vector<1x16xf32>
    %286 = vector.extract_strided_slice %285 {offsets = [0, 0], sizes = [1, 4], strides = [1, 1]} : vector<1x16xf32> to vector<1x4xf32>
    %cst_64 = arith.constant dense<0xFF800000> : vector<1xf32>
    %287 = vector.multi_reduction <maximumf>, %286, %cst_64 [1] : vector<1x4xf32> to vector<1xf32>
    %288 = vector.shape_cast %287 : vector<1xf32> to vector<1x1xf32>
    %289 = vector.extract_strided_slice %285 {offsets = [0, 4], sizes = [1, 4], strides = [1, 1]} : vector<1x16xf32> to vector<1x4xf32>
    %cst_65 = arith.constant dense<0xFF800000> : vector<1xf32>
    %290 = vector.multi_reduction <maximumf>, %289, %cst_65 [1] : vector<1x4xf32> to vector<1xf32>
    %291 = vector.shape_cast %290 : vector<1xf32> to vector<1x1xf32>
    %292 = vector.extract_strided_slice %285 {offsets = [0, 8], sizes = [1, 4], strides = [1, 1]} : vector<1x16xf32> to vector<1x4xf32>
    %cst_66 = arith.constant dense<0xFF800000> : vector<1xf32>
    %293 = vector.multi_reduction <maximumf>, %292, %cst_66 [1] : vector<1x4xf32> to vector<1xf32>
    %294 = vector.shape_cast %293 : vector<1xf32> to vector<1x1xf32>
    %295 = vector.extract_strided_slice %285 {offsets = [0, 12], sizes = [1, 4], strides = [1, 1]} : vector<1x16xf32> to vector<1x4xf32>
    %cst_67 = arith.constant dense<0xFF800000> : vector<1xf32>
    %296 = vector.multi_reduction <maximumf>, %295, %cst_67 [1] : vector<1x4xf32> to vector<1xf32>
    %297 = vector.shape_cast %296 : vector<1xf32> to vector<1x1xf32>
    %c27 = arith.constant 27 : index
    %298 = memref.load %arg1[%c27] : memref<36xf32, #tpu.memory_space<smem>>
    %299 = vector.broadcast %298 : f32 to vector<1x16x16xf32>
    %300 = arith.mulf %299, %1 : vector<1x16x16xf32>
    %c28 = arith.constant 28 : index
    %301 = memref.load %arg1[%c28] : memref<36xf32, #tpu.memory_space<smem>>
    %302 = vector.broadcast %301 : f32 to vector<1x16x16xf32>
    %303 = arith.mulf %302, %2 : vector<1x16x16xf32>
    %304 = arith.addf %300, %303 : vector<1x16x16xf32>
    %c29 = arith.constant 29 : index
    %305 = memref.load %arg1[%c29] : memref<36xf32, #tpu.memory_space<smem>>
    %306 = vector.broadcast %305 : f32 to vector<1x16x16xf32>
    %307 = arith.mulf %306, %3 : vector<1x16x16xf32>
    %308 = arith.addf %304, %307 : vector<1x16x16xf32>
    %c30 = arith.constant 30 : index
    %309 = memref.load %arg1[%c30] : memref<36xf32, #tpu.memory_space<smem>>
    %310 = vector.broadcast %309 : f32 to vector<1x16x16xf32>
    %311 = arith.mulf %310, %4 : vector<1x16x16xf32>
    %312 = arith.addf %308, %311 : vector<1x16x16xf32>
    %c31 = arith.constant 31 : index
    %313 = memref.load %arg1[%c31] : memref<36xf32, #tpu.memory_space<smem>>
    %314 = vector.broadcast %313 : f32 to vector<1x16x16xf32>
    %315 = arith.mulf %314, %5 : vector<1x16x16xf32>
    %316 = arith.addf %312, %315 : vector<1x16x16xf32>
    %c32 = arith.constant 32 : index
    %317 = memref.load %arg1[%c32] : memref<36xf32, #tpu.memory_space<smem>>
    %318 = vector.broadcast %317 : f32 to vector<1x16x16xf32>
    %319 = arith.mulf %318, %6 : vector<1x16x16xf32>
    %320 = arith.addf %316, %319 : vector<1x16x16xf32>
    %c33 = arith.constant 33 : index
    %321 = memref.load %arg1[%c33] : memref<36xf32, #tpu.memory_space<smem>>
    %322 = vector.broadcast %321 : f32 to vector<1x16x16xf32>
    %323 = arith.mulf %322, %7 : vector<1x16x16xf32>
    %324 = arith.addf %320, %323 : vector<1x16x16xf32>
    %c34 = arith.constant 34 : index
    %325 = memref.load %arg1[%c34] : memref<36xf32, #tpu.memory_space<smem>>
    %326 = vector.broadcast %325 : f32 to vector<1x16x16xf32>
    %327 = arith.mulf %326, %8 : vector<1x16x16xf32>
    %328 = arith.addf %324, %327 : vector<1x16x16xf32>
    %c35 = arith.constant 35 : index
    %329 = memref.load %arg1[%c35] : memref<36xf32, #tpu.memory_space<smem>>
    %330 = vector.broadcast %329 : f32 to vector<1x16x16xf32>
    %331 = arith.mulf %330, %9 : vector<1x16x16xf32>
    %332 = arith.addf %328, %331 : vector<1x16x16xf32>
    %c3_68 = arith.constant 3 : index
    %333 = memref.load %arg2[%c3_68] : memref<4xf32, #tpu.memory_space<smem>>
    %334 = vector.broadcast %333 : f32 to vector<1x16x16xf32>
    %335 = arith.addf %332, %334 : vector<1x16x16xf32>
    %cst_69 = arith.constant 0.000000e+00 : f32
    %336 = vector.broadcast %cst_69 : f32 to vector<1x16x16xf32>
    %337 = arith.maximumf %335, %336 : vector<1x16x16xf32>
    %338 = vector.extract_strided_slice %337 {offsets = [0, 0, 0], sizes = [1, 4, 16], strides = [1, 1, 1]} : vector<1x16x16xf32> to vector<1x4x16xf32>
    %cst_70 = arith.constant dense<0xFF800000> : vector<1x16xf32>
    %339 = vector.multi_reduction <maximumf>, %338, %cst_70 [1] : vector<1x4x16xf32> to vector<1x16xf32>
    %340 = vector.extract_strided_slice %339 {offsets = [0, 0], sizes = [1, 4], strides = [1, 1]} : vector<1x16xf32> to vector<1x4xf32>
    %cst_71 = arith.constant dense<0xFF800000> : vector<1xf32>
    %341 = vector.multi_reduction <maximumf>, %340, %cst_71 [1] : vector<1x4xf32> to vector<1xf32>
    %342 = vector.shape_cast %341 : vector<1xf32> to vector<1x1xf32>
    %343 = vector.extract_strided_slice %339 {offsets = [0, 4], sizes = [1, 4], strides = [1, 1]} : vector<1x16xf32> to vector<1x4xf32>
    %cst_72 = arith.constant dense<0xFF800000> : vector<1xf32>
    %344 = vector.multi_reduction <maximumf>, %343, %cst_72 [1] : vector<1x4xf32> to vector<1xf32>
    %345 = vector.shape_cast %344 : vector<1xf32> to vector<1x1xf32>
    %346 = vector.extract_strided_slice %339 {offsets = [0, 8], sizes = [1, 4], strides = [1, 1]} : vector<1x16xf32> to vector<1x4xf32>
    %cst_73 = arith.constant dense<0xFF800000> : vector<1xf32>
    %347 = vector.multi_reduction <maximumf>, %346, %cst_73 [1] : vector<1x4xf32> to vector<1xf32>
    %348 = vector.shape_cast %347 : vector<1xf32> to vector<1x1xf32>
    %349 = vector.extract_strided_slice %339 {offsets = [0, 12], sizes = [1, 4], strides = [1, 1]} : vector<1x16xf32> to vector<1x4xf32>
    %cst_74 = arith.constant dense<0xFF800000> : vector<1xf32>
    %350 = vector.multi_reduction <maximumf>, %349, %cst_74 [1] : vector<1x4xf32> to vector<1xf32>
    %351 = vector.shape_cast %350 : vector<1xf32> to vector<1x1xf32>
    %352 = vector.extract_strided_slice %337 {offsets = [0, 4, 0], sizes = [1, 4, 16], strides = [1, 1, 1]} : vector<1x16x16xf32> to vector<1x4x16xf32>
    %cst_75 = arith.constant dense<0xFF800000> : vector<1x16xf32>
    %353 = vector.multi_reduction <maximumf>, %352, %cst_75 [1] : vector<1x4x16xf32> to vector<1x16xf32>
    %354 = vector.extract_strided_slice %353 {offsets = [0, 0], sizes = [1, 4], strides = [1, 1]} : vector<1x16xf32> to vector<1x4xf32>
    %cst_76 = arith.constant dense<0xFF800000> : vector<1xf32>
    %355 = vector.multi_reduction <maximumf>, %354, %cst_76 [1] : vector<1x4xf32> to vector<1xf32>
    %356 = vector.shape_cast %355 : vector<1xf32> to vector<1x1xf32>
    %357 = vector.extract_strided_slice %353 {offsets = [0, 4], sizes = [1, 4], strides = [1, 1]} : vector<1x16xf32> to vector<1x4xf32>
    %cst_77 = arith.constant dense<0xFF800000> : vector<1xf32>
    %358 = vector.multi_reduction <maximumf>, %357, %cst_77 [1] : vector<1x4xf32> to vector<1xf32>
    %359 = vector.shape_cast %358 : vector<1xf32> to vector<1x1xf32>
    %360 = vector.extract_strided_slice %353 {offsets = [0, 8], sizes = [1, 4], strides = [1, 1]} : vector<1x16xf32> to vector<1x4xf32>
    %cst_78 = arith.constant dense<0xFF800000> : vector<1xf32>
    %361 = vector.multi_reduction <maximumf>, %360, %cst_78 [1] : vector<1x4xf32> to vector<1xf32>
    %362 = vector.shape_cast %361 : vector<1xf32> to vector<1x1xf32>
    %363 = vector.extract_strided_slice %353 {offsets = [0, 12], sizes = [1, 4], strides = [1, 1]} : vector<1x16xf32> to vector<1x4xf32>
    %cst_79 = arith.constant dense<0xFF800000> : vector<1xf32>
    %364 = vector.multi_reduction <maximumf>, %363, %cst_79 [1] : vector<1x4xf32> to vector<1xf32>
    %365 = vector.shape_cast %364 : vector<1xf32> to vector<1x1xf32>
    %366 = vector.extract_strided_slice %337 {offsets = [0, 8, 0], sizes = [1, 4, 16], strides = [1, 1, 1]} : vector<1x16x16xf32> to vector<1x4x16xf32>
    %cst_80 = arith.constant dense<0xFF800000> : vector<1x16xf32>
    %367 = vector.multi_reduction <maximumf>, %366, %cst_80 [1] : vector<1x4x16xf32> to vector<1x16xf32>
    %368 = vector.extract_strided_slice %367 {offsets = [0, 0], sizes = [1, 4], strides = [1, 1]} : vector<1x16xf32> to vector<1x4xf32>
    %cst_81 = arith.constant dense<0xFF800000> : vector<1xf32>
    %369 = vector.multi_reduction <maximumf>, %368, %cst_81 [1] : vector<1x4xf32> to vector<1xf32>
    %370 = vector.shape_cast %369 : vector<1xf32> to vector<1x1xf32>
    %371 = vector.extract_strided_slice %367 {offsets = [0, 4], sizes = [1, 4], strides = [1, 1]} : vector<1x16xf32> to vector<1x4xf32>
    %cst_82 = arith.constant dense<0xFF800000> : vector<1xf32>
    %372 = vector.multi_reduction <maximumf>, %371, %cst_82 [1] : vector<1x4xf32> to vector<1xf32>
    %373 = vector.shape_cast %372 : vector<1xf32> to vector<1x1xf32>
    %374 = vector.extract_strided_slice %367 {offsets = [0, 8], sizes = [1, 4], strides = [1, 1]} : vector<1x16xf32> to vector<1x4xf32>
    %cst_83 = arith.constant dense<0xFF800000> : vector<1xf32>
    %375 = vector.multi_reduction <maximumf>, %374, %cst_83 [1] : vector<1x4xf32> to vector<1xf32>
    %376 = vector.shape_cast %375 : vector<1xf32> to vector<1x1xf32>
    %377 = vector.extract_strided_slice %367 {offsets = [0, 12], sizes = [1, 4], strides = [1, 1]} : vector<1x16xf32> to vector<1x4xf32>
    %cst_84 = arith.constant dense<0xFF800000> : vector<1xf32>
    %378 = vector.multi_reduction <maximumf>, %377, %cst_84 [1] : vector<1x4xf32> to vector<1xf32>
    %379 = vector.shape_cast %378 : vector<1xf32> to vector<1x1xf32>
    %380 = vector.extract_strided_slice %337 {offsets = [0, 12, 0], sizes = [1, 4, 16], strides = [1, 1, 1]} : vector<1x16x16xf32> to vector<1x4x16xf32>
    %cst_85 = arith.constant dense<0xFF800000> : vector<1x16xf32>
    %381 = vector.multi_reduction <maximumf>, %380, %cst_85 [1] : vector<1x4x16xf32> to vector<1x16xf32>
    %382 = vector.extract_strided_slice %381 {offsets = [0, 0], sizes = [1, 4], strides = [1, 1]} : vector<1x16xf32> to vector<1x4xf32>
    %cst_86 = arith.constant dense<0xFF800000> : vector<1xf32>
    %383 = vector.multi_reduction <maximumf>, %382, %cst_86 [1] : vector<1x4xf32> to vector<1xf32>
    %384 = vector.shape_cast %383 : vector<1xf32> to vector<1x1xf32>
    %385 = vector.extract_strided_slice %381 {offsets = [0, 4], sizes = [1, 4], strides = [1, 1]} : vector<1x16xf32> to vector<1x4xf32>
    %cst_87 = arith.constant dense<0xFF800000> : vector<1xf32>
    %386 = vector.multi_reduction <maximumf>, %385, %cst_87 [1] : vector<1x4xf32> to vector<1xf32>
    %387 = vector.shape_cast %386 : vector<1xf32> to vector<1x1xf32>
    %388 = vector.extract_strided_slice %381 {offsets = [0, 8], sizes = [1, 4], strides = [1, 1]} : vector<1x16xf32> to vector<1x4xf32>
    %cst_88 = arith.constant dense<0xFF800000> : vector<1xf32>
    %389 = vector.multi_reduction <maximumf>, %388, %cst_88 [1] : vector<1x4xf32> to vector<1xf32>
    %390 = vector.shape_cast %389 : vector<1xf32> to vector<1x1xf32>
    %391 = vector.extract_strided_slice %381 {offsets = [0, 12], sizes = [1, 4], strides = [1, 1]} : vector<1x16xf32> to vector<1x4xf32>
    %cst_89 = arith.constant dense<0xFF800000> : vector<1xf32>
    %392 = vector.multi_reduction <maximumf>, %391, %cst_89 [1] : vector<1x4xf32> to vector<1xf32>
    %393 = vector.shape_cast %392 : vector<1xf32> to vector<1x1xf32>
    %394 = tpu.concatenate %54, %57, %60, %63, %68, %71, %74, %77, %82, %85, %88, %91, %96, %99, %102, %105 in 1 : vector<1x1xf32>, vector<1x1xf32>, vector<1x1xf32>, vector<1x1xf32>, vector<1x1xf32>, vector<1x1xf32>, vector<1x1xf32>, vector<1x1xf32>, vector<1x1xf32>, vector<1x1xf32>, vector<1x1xf32>, vector<1x1xf32>, vector<1x1xf32>, vector<1x1xf32>, vector<1x1xf32>, vector<1x1xf32> -> vector<1x16xf32>
    %395 = tpu.concatenate %150, %153, %156, %159, %164, %167, %170, %173, %178, %181, %184, %187, %192, %195, %198, %201 in 1 : vector<1x1xf32>, vector<1x1xf32>, vector<1x1xf32>, vector<1x1xf32>, vector<1x1xf32>, vector<1x1xf32>, vector<1x1xf32>, vector<1x1xf32>, vector<1x1xf32>, vector<1x1xf32>, vector<1x1xf32>, vector<1x1xf32>, vector<1x1xf32>, vector<1x1xf32>, vector<1x1xf32>, vector<1x1xf32> -> vector<1x16xf32>
    %396 = tpu.concatenate %246, %249, %252, %255, %260, %263, %266, %269, %274, %277, %280, %283, %288, %291, %294, %297 in 1 : vector<1x1xf32>, vector<1x1xf32>, vector<1x1xf32>, vector<1x1xf32>, vector<1x1xf32>, vector<1x1xf32>, vector<1x1xf32>, vector<1x1xf32>, vector<1x1xf32>, vector<1x1xf32>, vector<1x1xf32>, vector<1x1xf32>, vector<1x1xf32>, vector<1x1xf32>, vector<1x1xf32>, vector<1x1xf32> -> vector<1x16xf32>
    %397 = tpu.concatenate %342, %345, %348, %351, %356, %359, %362, %365, %370, %373, %376, %379, %384, %387, %390, %393 in 1 : vector<1x1xf32>, vector<1x1xf32>, vector<1x1xf32>, vector<1x1xf32>, vector<1x1xf32>, vector<1x1xf32>, vector<1x1xf32>, vector<1x1xf32>, vector<1x1xf32>, vector<1x1xf32>, vector<1x1xf32>, vector<1x1xf32>, vector<1x1xf32>, vector<1x1xf32>, vector<1x1xf32>, vector<1x1xf32> -> vector<1x16xf32>
    %398 = tpu.concatenate %394, %395, %396, %397 in 1 : vector<1x16xf32>, vector<1x16xf32>, vector<1x16xf32>, vector<1x16xf32> -> vector<1x64xf32>
    %c0_90 = arith.constant 0 : index
    %c0_91 = arith.constant 0 : index
    %399 = vector.load %arg4[%c0_90, %c0_91] : memref<64x128xf32, #tpu.memory_space<vmem>>, vector<64x128xf32>
    %cst_92 = arith.constant dense<0.000000e+00> : vector<1x128xf32>
    %400 = tpu.matmul %398, %399, %cst_92 {dimension_numbers = #tpu.dot_dimension_numbers<[1], [0], [0], [1], [0, 0, 1, 1], [], []>} : vector<1x64xf32>, vector<64x128xf32>, vector<1x128xf32> -> vector<1x128xf32>
    %c0_93 = arith.constant 0 : index
    %c0_94 = arith.constant 0 : index
    %401 = vector.load %arg5[%c0_93, %c0_94] : memref<1x128xf32, #tpu.memory_space<vmem>>, vector<1x128xf32>
    %402 = arith.addf %400, %401 : vector<1x128xf32>
    %403 = vector.shape_cast %402 : vector<1x128xf32> to vector<1x1x128xf32>
    %c0_95 = arith.constant 0 : index
    %c0_96 = arith.constant 0 : index
    %c0_97 = arith.constant 0 : index
    %404 = vector.load %arg6[%c0_95, %c0_96, %c0_97] : memref<1x1x128xf32, #tpu.memory_space<vmem>>, vector<1x1x128xf32>
    tpu.vector_store %arg6[%c0_95, %c0_96, %c0_97], %403 {strides = array<i32>} : memref<1x1x128xf32, #tpu.memory_space<vmem>>, vector<1x1x128xf32>,
    return
  }
  func.func @transform_0(%arg0: i32) -> i32 {
    %c0_i32 = arith.constant 0 : i32
    %c0_i32_0 = arith.constant 0 : i32
    return %c0_i32 : i32
  }
  func.func @transform_1(%arg0: i32) -> i32 {
    %c0_i32 = arith.constant 0 : i32
    %c0_i32_0 = arith.constant 0 : i32
    return %c0_i32 : i32
  }
  func.func @transform_2(%arg0: i32) -> (i32, i32, i32) {
    %c0_i32 = arith.constant 0 : i32
    %c0_i32_0 = arith.constant 0 : i32
    %c0_i32_1 = arith.constant 0 : i32
    return %arg0, %c0_i32, %c0_i32_0 : i32, i32, i32
  }
  func.func @transform_3(%arg0: i32) -> (i32, i32) {
    %c0_i32 = arith.constant 0 : i32
    %c0_i32_0 = arith.constant 0 : i32
    %c0_i32_1 = arith.constant 0 : i32
    return %c0_i32, %c0_i32_0 : i32, i32
  }
  func.func @transform_4(%arg0: i32) -> (i32, i32) {
    %c0_i32 = arith.constant 0 : i32
    %c0_i32_0 = arith.constant 0 : i32
    %c0_i32_1 = arith.constant 0 : i32
    return %c0_i32, %c0_i32_0 : i32, i32
  }
  func.func @transform_5(%arg0: i32) -> (i32, i32, i32) {
    %c0_i32 = arith.constant 0 : i32
    %c0_i32_0 = arith.constant 0 : i32
    %c0_i32_1 = arith.constant 0 : i32
    return %arg0, %c0_i32, %c0_i32_0 : i32, i32, i32
  }
}

</mosaic_0001>

<llo_original>
// kernel: tpu_custom_call.1
$region0: #{tpu_custom_call.1}
  #allocation0 [shape = 'u32[]', space=smem, size = 0x4, offset = 0x4, fixed_abs, tag = 'smem constant byte address 0x4 - core index']
  #allocation1 [shape = 'u32[72,128]{1,0:T(1,128)}', space=vmem, size = 0x9000, scoped, tag = 'internal scratch']
  %s0 = inlined_call_operand.vmem [shape: f32[36], index: 0, kind: input, shape index: {}]
  %s1 = inlined_call_operand.vmem [shape: f32[4], index: 1, kind: input, shape index: {}]
  %s2 = inlined_call_operand.vmem [shape: f32[2,18,18], index: 2, kind: input, shape index: {}]
  %s3 = inlined_call_operand.vmem [shape: f32[64,128], index: 3, kind: input, shape index: {}]
  %s4 = inlined_call_operand.vmem [shape: f32[1,128], index: 4, kind: input, shape index: {}]
  %s5 = inlined_call_operand.hbm [shape: f32[2,1,128], index: 5, kind: output, shape index: {}]
  %s6 = sld [smem:[#allocation0]]
  $region61: #{tpu_custom_call.1} parent=0
    _
  %s8 = ssub.s32 1, %s6
  %s9 = scalar_select 0, %s8, %s6
  $region1: #{tpu_custom_call.1} parent=0
    #allocation2 [shape = 'u8[512]{0}', space=smem, size = 0x200, scoped, tag = 'input window, operand 0, single buffered']
    #allocation3 [shape = 's32[2]{0}', space=sflag, size = 0x8, scoped, tag = 'scoped memory for tpu_custom_call.1']
    #allocation4 [shape = 's32[2]{0}', space=sflag, size = 0x8, scoped, tag = 'scoped memory for tpu_custom_call.1']
    #allocation5 [shape = 'u8[512]{0}', space=smem, size = 0x200, scoped, tag = 'input window, operand 1, single buffered']
    #allocation6 [shape = 's32[1]{0}', space=sflag, size = 0x4, scoped, tag = 'scoped memory for tpu_custom_call.1']
    #allocation7 [shape = 'u8[1024]{0}', space=vmem, size = 0x400, scoped, tag = 'output window, operand 0']
    %10 = vsyncpa [#allocation4], 0
    %11 = vsyncpa [#allocation6], 0
    %12 = vsyncpa [#allocation3], 0
    %s13 = scalar_lea.sflag [#allocation3], 1
    %14 = vsyncpa %s13, 0
    loop: start=0, step=1, limit=4
    $region2: #{tpu_custom_call.1} parent=1 // loop_pre_header
      _
    $region3: #{tpu_custom_call.1} parent=1 // loop_header
      %s16 = sphi 0, %s20
      %p17 = scmp.ge.s32.totalorder %s16, 4
      %s24 = sphi 0, %s24
      %s26 = sphi 0, %s24
      %s27 = sphi 0, %s26
      %s41 = sphi 0, %s27
      %s45 = sphi 0, %s45
      %s47 = sphi 0, %s45
      %s48 = sphi 0, %s47
      %s62 = sphi 0, %s48
      %s68 = sphi 0, %s70
      %s71 = sphi 0, %s68
      %s72 = sphi 0, %s71
      %s88 = sphi 0, %s72
      %s92 = sphi 0, %s92
      %s94 = sphi 0, %s92
      %s95 = sphi 0, %s94
      %s109 = sphi 0, %s95
      %s113 = sphi 0, %s113
      %s115 = sphi 0, %s113
      %s116 = sphi 0, %s115
      %s130 = sphi 0, %s116
      %s136 = sphi 0, %s138
      %s139 = sphi 0, %s136
      %s140 = sphi 0, %s139
      %s156 = sphi 0, %s140
    $region4: #{tpu_custom_call.1} parent=1 // loop_header_branch
      %19 = sbr.rel (%p17) target = $region8
    $region5: #{tpu_custom_call.1} parent=1 // loop_body
      %s21 = ssub.s32 %s16, 1
      %s22 = ssub.s32 %s16, 2
      %s23 = sadd.s32 %s16, 1
      %s25 = sadd.s32 %s24, 1
      %p28 = scmp.eq.s32.totalorder %s16, 1
      %p29 = scmp.ne.s32.totalorder %s24, %s26
      %p30 = scmp.eq.s32.totalorder %s16, 0
      %p31 = por %p29, %p30
      %p32 = scmp.ne.s32.totalorder %s24, %s26
      %p33 = scmp.eq.s32.totalorder %s21, 1
      %p34 = por %p32, %p33
      %p35 = scmp.ne.s32.totalorder %s26, %s27
      %p36 = scmp.eq.s32.totalorder %s21, 0
      %p37 = por %p35, %p36
      %p38 = scmp.ne.s32.totalorder %s26, %s27
      %p39 = scmp.eq.s32.totalorder %s22, 1
      %p40 = por %p38, %p39
      %p42 = scmp.ne.s32.totalorder %s27, %s41
      %p43 = scmp.eq.s32.totalorder %s22, 0
      %p44 = por %p42, %p43
      %s46 = sadd.s32 %s45, 1
      %p49 = scmp.eq.s32.totalorder %s16, 1
      %p50 = scmp.ne.s32.totalorder %s45, %s47
      %p51 = scmp.eq.s32.totalorder %s16, 0
      %p52 = por %p50, %p51
      %p53 = scmp.ne.s32.totalorder %s45, %s47
      %p54 = scmp.eq.s32.totalorder %s21, 1
      %p55 = por %p53, %p54
      %p56 = scmp.ne.s32.totalorder %s47, %s48
      %p57 = scmp.eq.s32.totalorder %s21, 0
      %p58 = por %p56, %p57
      %p59 = scmp.ne.s32.totalorder %s47, %s48
      %p60 = scmp.eq.s32.totalorder %s22, 1
      %p61 = por %p59, %p60
      %p63 = scmp.ne.s32.totalorder %s48, %s62
      %p64 = scmp.eq.s32.totalorder %s22, 0
      %p65 = por %p63, %p64
      %s66 = ssub.s32 %s16, %s23
      %p67 = scmp.eq.s32.totalorder %s66, 0
      %s69 = sadd.s32 %s68, 1
      %s70 = scalar_select %p67, %s68, %s69
      %p73 = pneg %p67
      %p74 = scmp.eq.s32.totalorder %s16, 1
      %p75 = por %p73, %p74
      %p76 = scmp.ne.s32.totalorder %s68, %s71
      %p77 = scmp.eq.s32.totalorder %s16, 0
      %p78 = por %p76, %p77
      %p79 = scmp.ne.s32.totalorder %s68, %s71
      %p80 = scmp.eq.s32.totalorder %s21, 1
      %p81 = por %p79, %p80
      %p82 = scmp.ne.s32.totalorder %s71, %s72
      %p83 = scmp.eq.s32.totalorder %s21, 0
      %p84 = por %p82, %p83
      %p85 = scmp.ne.s32.totalorder %s71, %s72
      %p86 = scmp.eq.s32.totalorder %s22, 1
      %p87 = por %p85, %p86
      %p89 = scmp.ne.s32.totalorder %s72, %s88
      %p90 = scmp.eq.s32.totalorder %s22, 0
      %p91 = por %p89, %p90
      %s93 = sadd.s32 %s92, 1
      %p96 = scmp.eq.s32.totalorder %s16, 1
      %p97 = scmp.ne.s32.totalorder %s92, %s94
      %p98 = scmp.eq.s32.totalorder %s16, 0
      %p99 = por %p97, %p98
      %p100 = scmp.ne.s32.totalorder %s92, %s94
      %p101 = scmp.eq.s32.totalorder %s21, 1
      %p102 = por %p100, %p101
      %p103 = scmp.ne.s32.totalorder %s94, %s95
      %p104 = scmp.eq.s32.totalorder %s21, 0
      %p105 = por %p103, %p104
      %p106 = scmp.ne.s32.totalorder %s94, %s95
      %p107 = scmp.eq.s32.totalorder %s22, 1
      %p108 = por %p106, %p107
      %p110 = scmp.ne.s32.totalorder %s95, %s109
      %p111 = scmp.eq.s32.totalorder %s22, 0
      %p112 = por %p110, %p111
      %s114 = sadd.s32 %s113, 1
      %p117 = scmp.eq.s32.totalorder %s16, 1
      %p118 = scmp.ne.s32.totalorder %s113, %s115
      %p119 = scmp.eq.s32.totalorder %s16, 0
      %p120 = por %p118, %p119
      %p121 = scmp.ne.s32.totalorder %s113, %s115
      %p122 = scmp.eq.s32.totalorder %s21, 1
      %p123 = por %p121, %p122
      %p124 = scmp.ne.s32.totalorder %s115, %s116
      %p125 = scmp.eq.s32.totalorder %s21, 0
      %p126 = por %p124, %p125
      %p127 = scmp.ne.s32.totalorder %s115, %s116
      %p128 = scmp.eq.s32.totalorder %s22, 1
      %p129 = por %p127, %p128
      %p131 = scmp.ne.s32.totalorder %s116, %s130
      %p132 = scmp.eq.s32.totalorder %s22, 0
      %p133 = por %p131, %p132
      %s134 = ssub.s32 %s16, %s23
      %p135 = scmp.eq.s32.totalorder %s134, 0
      %s137 = sadd.s32 %s136, 1
      %s138 = scalar_select %p135, %s136, %s137
      %p141 = pneg %p135
      %p142 = scmp.eq.s32.totalorder %s16, 1
      %p143 = por %p141, %p142
      %p144 = scmp.ne.s32.totalorder %s136, %s139
      %p145 = scmp.eq.s32.totalorder %s16, 0
      %p146 = por %p144, %p145
      %p147 = scmp.ne.s32.totalorder %s136, %s139
      %p148 = scmp.eq.s32.totalorder %s21, 1
      %p149 = por %p147, %p148
      %p150 = scmp.ne.s32.totalorder %s139, %s140
      %p151 = scmp.eq.s32.totalorder %s21, 0
      %p152 = por %p150, %p151
      %p153 = scmp.ne.s32.totalorder %s139, %s140
      %p154 = scmp.eq.s32.totalorder %s22, 1
      %p155 = por %p153, %p154
      %p157 = scmp.ne.s32.totalorder %s140, %s156
      %p158 = scmp.eq.s32.totalorder %s22, 0
      %p159 = por %p157, %p158
      %p160 = scmp.le.s32.totalorder 1, %s16
      %p161 = scmp.lt.s32.totalorder %s16, 3
      %p162 = pnand %p160, %p161
      %p163 = pneg %p162
      // Predicated region
      $region9: #{tpu_custom_call.1} parent=5 // pred_check
        _
      $region10: #{tpu_custom_call.1} parent=5 // pred_check_branch
        %165 = sbr.rel (%p162) target = $region12
      $region11: #{tpu_custom_call.1} parent=5 // pred_region
        %s166 = ssub.s32 %s16, 1
        // Predicated region
        $region13: #{tpu_custom_call.1} parent=11 // pred_check
          %p167 = pneg %p37
        $region14: #{tpu_custom_call.1} parent=11 // pred_check_branch
          %169 = sbr.rel (%p167) target = $region16
        $region15: #{tpu_custom_call.1} parent=11 // pred_region
          %171 = vsyncadd [#allocation4], 0
          %s173 = sshll.u32 %s0, 4
          %s174 = int_to_ptr.vmem [resolvable:$true] %s173
          %176 = dma.vmem_to_smem %s174, 16, [#allocation2], [#allocation4]
        $region16: #{tpu_custom_call.1} parent=11 // pred_fallthru
          _
        // Predicated region
        $region17: #{tpu_custom_call.1} parent=11 // pred_check
          %p177 = pneg %p58
        $region18: #{tpu_custom_call.1} parent=11 // pred_check_branch
          %179 = sbr.rel (%p177) target = $region20
        $region19: #{tpu_custom_call.1} parent=11 // pred_region
          %181 = vsyncadd [#allocation6], 0
          %s183 = sshll.u32 %s1, 4
          %s184 = int_to_ptr.vmem [resolvable:$true] %s183
          %186 = dma.vmem_to_smem %s184, 16, [#allocation5], [#allocation6]
        $region20: #{tpu_custom_call.1} parent=11 // pred_fallthru
          _
        // Predicated region
        $region21: #{tpu_custom_call.1} parent=11 // pred_check
          %p187 = pneg %p105
        $region22: #{tpu_custom_call.1} parent=11 // pred_check_branch
          %189 = sbr.rel (%p187) target = $region24
        $region23: #{tpu_custom_call.1} parent=11 // pred_region
          _
        $region24: #{tpu_custom_call.1} parent=11 // pred_fallthru
          _
        // Predicated region
        $region25: #{tpu_custom_call.1} parent=11 // pred_check
          %p190 = pneg %p126
        $region26: #{tpu_custom_call.1} parent=11 // pred_check_branch
          %192 = sbr.rel (%p190) target = $region28
        $region27: #{tpu_custom_call.1} parent=11 // pred_region
          _
        $region28: #{tpu_custom_call.1} parent=11 // pred_fallthru
          _
      $region12: #{tpu_custom_call.1} parent=5 // pred_fallthru
        _
      %p193 = scmp.lt.s32.totalorder %s16, 2
      // Predicated region
      $region29: #{tpu_custom_call.1} parent=5 // pred_check
        %p194 = pneg %p193
      $region30: #{tpu_custom_call.1} parent=5 // pred_check_branch
        %196 = sbr.rel (%p194) target = $region32
      $region31: #{tpu_custom_call.1} parent=5 // pred_region
        // Predicated region
        $region33: #{tpu_custom_call.1} parent=31 // pred_check
          %p197 = pneg %p78
        $region34: #{tpu_custom_call.1} parent=31 // pred_check_branch
          %199 = sbr.rel (%p197) target = $region36
        $region35: #{tpu_custom_call.1} parent=31 // pred_region
          %p200 = scmp.lt.s32.totalorder %s16, 1
          %s201 = scalar_select %p200, %s16, 1
          %s202 = smul.addr %s201, 3
          %s203 = smul.addr %s202, 8
          %s204 = scalar_lea.vmem %s2, %s203
        $region36: #{tpu_custom_call.1} parent=31 // pred_fallthru
          _
      $region32: #{tpu_custom_call.1} parent=5 // pred_fallthru
        _
      %p205 = scmp.le.s32.totalorder 1, %s16
      %p206 = scmp.lt.s32.totalorder %s16, 3
      %p207 = pnand %p205, %p206
      %p208 = pneg %p207
      // Predicated region
      $region37: #{tpu_custom_call.1} parent=5 // pred_check
        _
      $region38: #{tpu_custom_call.1} parent=5 // pred_check_branch
        %210 = sbr.rel (%p207) target = $region40
      $region39: #{tpu_custom_call.1} parent=5 // pred_region
        %s211 = ssub.s32 %s16, 1
        // Predicated region
        $region41: #{tpu_custom_call.1} parent=39 // pred_check
          %p212 = pneg %p37
        $region42: #{tpu_custom_call.1} parent=39 // pred_check_branch
          %214 = sbr.rel (%p212) target = $region44
        $region43: #{tpu_custom_call.1} parent=39 // pred_region
          %216 = dma.done [#allocation4], 16
        $region44: #{tpu_custom_call.1} parent=39 // pred_fallthru
          _
        // Predicated region
        $region45: #{tpu_custom_call.1} parent=39 // pred_check
          %p217 = pneg %p58
        $region46: #{tpu_custom_call.1} parent=39 // pred_check_branch
          %219 = sbr.rel (%p217) target = $region48
        $region47: #{tpu_custom_call.1} parent=39 // pred_region
          %221 = dma.done [#allocation6], 16
        $region48: #{tpu_custom_call.1} parent=39 // pred_fallthru
          _
        %222 = sfence
        %p223 = pneg %p37
        %p224 = pneg %p34
        %p225 = pneg %p58
        %p226 = pneg %p55
        %p227 = scmp.lt.s32.totalorder %s21, 1
        %s228 = scalar_select %p227, %s21, 1
        %s229 = smul.addr %s228, 3
        %s230 = smul.addr %s229, 8
        %s231 = scalar_lea.vmem %s2, %s230
        %p232 = pneg %p84
        %p233 = pneg %p81
        %p234 = pneg %p105
        %p235 = pneg %p102
        %p236 = pneg %p126
        %p237 = pneg %p123
        %p238 = pneg %p152
        %p239 = pneg %p149
        %s240 = sand.u32 %s139, 1
        %s241 = scalar_lea.sflag [#allocation3], %s240
        %s242 = sand.u32 %s139, 1
        %s243 = scalar_lea.vmem [#allocation7], %s242
        %p244 = scmp.lt.s32.totalorder %s21, 1
        %s245 = scalar_select %p244, %s21, 1
        %s246 = smul.addr %s245, 3
        %s247 = smul.addr %s246, 8
        %s248 = scalar_lea.vmem %s2, %s247
        %v249 = vld [vmem:[%s248] sm:$0xff]
        %v250 = vld [vmem:[%s248 + $0x8] sm:$0xff]
        %v251 = vld [vmem:[%s248 + $0x10] sm:$0x3]
        %s252 = sld [smem:[#allocation2]]
        %v253 = vstv %s252
        %v254 = vmul.f32 %v253, %v249
        %v255 = vmul.f32 %v253, %v250
        %s256 = sld [smem:[#allocation2 + $0x1]]
        %v257 = vstv %s256
        %v258 = vmul.f32 %v257, %v249
        %v259 = vmul.f32 %v257, %v250
        %262 = vrot.lane.b32.xlu0 %v258, 127
        %v263 = vpop.permute.xlu0 %262
        %264 = vrot.lane.b32.xlu0 %v259, 127
        %v265 = vpop.permute.xlu0 %264
        %v268 = vadd.f32 %v254, %v263
        %v269 = vadd.f32 %v255, %v265
        %s270 = sld [smem:[#allocation2 + $0x2]]
        %v271 = vstv %s270
        %v272 = vmul.f32 %v271, %v249
        %v273 = vmul.f32 %v271, %v250
        %276 = vrot.lane.b32.xlu0 %v272, 126
        %v277 = vpop.permute.xlu0 %276
        %278 = vrot.lane.b32.xlu0 %v273, 126
        %v279 = vpop.permute.xlu0 %278
        %v282 = vadd.f32 %v268, %v277
        %v283 = vadd.f32 %v269, %v279
        %s284 = sld [smem:[#allocation2 + $0x3]]
        %v285 = vstv %s284
        %v286 = vmul.f32 %v285, %v249
        %v287 = vmul.f32 %v285, %v250
        %v288 = vmul.f32 %v285, %v251
        %vm292 = vcmask 1046528
        %v293 = vrot.slane %v286, 1
        %v294 = vrot.slane %v287, 1
        %v295 = vsel %vm292, %v293, %v294
        %v296 = vrot.slane %v288, 1
        %v297 = vsel %vm292, %v294, %v296
        %v300 = vadd.f32 %v282, %v295
        %v301 = vadd.f32 %v283, %v297
        %s302 = sld [smem:[#allocation2 + $0x4]]
        %v303 = vstv %s302
        %v304 = vmul.f32 %v303, %v249
        %v305 = vmul.f32 %v303, %v250
        %v306 = vmul.f32 %v303, %v251
        %v310 = vrot.slane %v304, 1
        %v311 = vrot.slane %v305, 1
        %v312 = vsel %vm292, %v310, %v311
        %v313 = vrot.slane %v306, 1
        %v314 = vsel %vm292, %v311, %v313
        %315 = vrot.lane.b32.xlu0 %v312, 127
        %v316 = vpop.permute.xlu0 %315
        %317 = vrot.lane.b32.xlu0 %v314, 127
        %v318 = vpop.permute.xlu0 %317
        %v321 = vadd.f32 %v300, %v316
        %v322 = vadd.f32 %v301, %v318
        %s323 = sld [smem:[#allocation2 + $0x5]]
        %v324 = vstv %s323
        %v325 = vmul.f32 %v324, %v249
        %v326 = vmul.f32 %v324, %v250
        %v327 = vmul.f32 %v324, %v251
        %v331 = vrot.slane %v325, 1
        %v332 = vrot.slane %v326, 1
        %v333 = vsel %vm292, %v331, %v332
        %v334 = vrot.slane %v327, 1
        %v335 = vsel %vm292, %v332, %v334
        %336 = vrot.lane.b32.xlu0 %v333, 126
        %v337 = vpop.permute.xlu0 %336
        %338 = vrot.lane.b32.xlu0 %v335, 126
        %v339 = vpop.permute.xlu0 %338
        %v342 = vadd.f32 %v321, %v337
        %v343 = vadd.f32 %v322, %v339
        %s344 = sld [smem:[#allocation2 + $0x6]]
        %v345 = vstv %s344
        %v346 = vmul.f32 %v345, %v249
        %v347 = vmul.f32 %v345, %v250
        %v348 = vmul.f32 %v345, %v251
        %vm352 = vcmask 1045504
        %v353 = vrot.slane %v346, 2
        %v354 = vrot.slane %v347, 2
        %v355 = vsel %vm352, %v353, %v354
        %v356 = vrot.slane %v348, 2
        %v357 = vsel %vm352, %v354, %v356
        %v360 = vadd.f32 %v342, %v355
        %v361 = vadd.f32 %v343, %v357
        %s362 = sld [smem:[#allocation2 + $0x7]]
        %v363 = vstv %s362
        %v364 = vmul.f32 %v363, %v249
        %v365 = vmul.f32 %v363, %v250
        %v366 = vmul.f32 %v363, %v251
        %v370 = vrot.slane %v364, 2
        %v371 = vrot.slane %v365, 2
        %v372 = vsel %vm352, %v370, %v371
        %v373 = vrot.slane %v366, 2
        %v374 = vsel %vm352, %v371, %v373
        %375 = vrot.lane.b32.xlu0 %v372, 127
        %v376 = vpop.permute.xlu0 %375
        %377 = vrot.lane.b32.xlu0 %v374, 127
        %v378 = vpop.permute.xlu0 %377
        %v381 = vadd.f32 %v360, %v376
        %v382 = vadd.f32 %v361, %v378
        %s383 = sld [smem:[#allocation2 + $0x8]]
        %v384 = vstv %s383
        %v385 = vmul.f32 %v384, %v249
        %v386 = vmul.f32 %v384, %v250
        %v387 = vmul.f32 %v384, %v251
        %v391 = vrot.slane %v385, 2
        %v392 = vrot.slane %v386, 2
        %v393 = vsel %vm352, %v391, %v392
        %v394 = vrot.slane %v387, 2
        %v395 = vsel %vm352, %v392, %v394
        %396 = vrot.lane.b32.xlu0 %v393, 126
        %v397 = vpop.permute.xlu0 %396
        %398 = vrot.lane.b32.xlu0 %v395, 126
        %v399 = vpop.permute.xlu0 %398
        %v402 = vadd.f32 %v381, %v397
        %v403 = vadd.f32 %v382, %v399
        %s404 = sld [smem:[#allocation5]]
        %v405 = vstv %s404
        %v406 = vadd.f32 %v402, %v405
        %v407 = vadd.f32 %v403, %v405
        %v408 = vmax.f32 %v406, 0.0
        %v409 = vmax.f32 %v407, 0.0
        %vm410 = vcmask 125952
        %v411 = vsel %vm410, %v408, -inf
        %v412 = vrot.slane %v411, 4
        %v413 = vmax.f32 %v411, %v412
        %v414 = vrot.slane %v413, 2
        %v415 = vmax.f32 %v413, %v414
        %v416 = vrot.slane %v415, 1
        %v417 = vmax.f32 %v415, %v416
        %vm418 = vcmask 31744
        %v419 = vsel %vm418, %v417, -inf
        %420 = vmax.xlane.f32.xlu0 %v419
        %v421 = vpop.xlane.xlu0 %420
        %vm422 = vcmask 64544
        %v423 = vsel %vm422, %v417, -inf
        %424 = vmax.xlane.f32.xlu0 %v423
        %v425 = vpop.xlane.xlu0 %424
        %vm426 = vcmask 97344
        %v427 = vsel %vm426, %v417, -inf
        %428 = vmax.xlane.f32.xlu0 %v427
        %v429 = vpop.xlane.xlu0 %428
        %vm430 = vcmask 130144
        %v431 = vsel %vm430, %v417, -inf
        %432 = vmax.xlane.f32.xlu0 %v431
        %v433 = vpop.xlane.xlu0 %432
        %vm434 = vcmask 130052
        %v435 = vsel %vm434, %v408, -inf
        %v436 = vrot.slane %v435, 4
        %v437 = vmax.f32 %v435, %v436
        %v438 = vrot.slane %v437, 2
        %v439 = vmax.f32 %v437, %v438
        %v440 = vrot.slane %v439, 1
        %v441 = vmax.f32 %v439, %v440
        %v442 = vsel %vm418, %v441, -inf
        %443 = vmax.xlane.f32.xlu0 %v442
        %v444 = vpop.xlane.xlu0 %443
        %v445 = vsel %vm422, %v441, -inf
        %446 = vmax.xlane.f32.xlu0 %v445
        %v447 = vpop.xlane.xlu0 %446
        %v448 = vsel %vm426, %v441, -inf
        %449 = vmax.xlane.f32.xlu0 %v448
        %v450 = vpop.xlane.xlu0 %449
        %v451 = vsel %vm430, %v441, -inf
        %452 = vmax.xlane.f32.xlu0 %v451
        %v453 = vpop.xlane.xlu0 %452
        %v454 = vsel %vm410, %v409, -inf
        %v455 = vrot.slane %v454, 4
        %v456 = vmax.f32 %v454, %v455
        %v457 = vrot.slane %v456, 2
        %v458 = vmax.f32 %v456, %v457
        %v459 = vrot.slane %v458, 1
        %v460 = vmax.f32 %v458, %v459
        %v461 = vsel %vm418, %v460, -inf
        %462 = vmax.xlane.f32.xlu0 %v461
        %v463 = vpop.xlane.xlu0 %462
        %v464 = vsel %vm422, %v460, -inf
        %465 = vmax.xlane.f32.xlu0 %v464
        %v466 = vpop.xlane.xlu0 %465
        %v467 = vsel %vm426, %v460, -inf
        %468 = vmax.xlane.f32.xlu0 %v467
        %v469 = vpop.xlane.xlu0 %468
        %v470 = vsel %vm430, %v460, -inf
        %471 = vmax.xlane.f32.xlu0 %v470
        %v472 = vpop.xlane.xlu0 %471
        %v473 = vsel %vm434, %v409, -inf
        %v474 = vrot.slane %v473, 4
        %v475 = vmax.f32 %v473, %v474
        %v476 = vrot.slane %v475, 2
        %v477 = vmax.f32 %v475, %v476
        %v478 = vrot.slane %v477, 1
        %v479 = vmax.f32 %v477, %v478
        %v480 = vsel %vm418, %v479, -inf
        %481 = vmax.xlane.f32.xlu0 %v480
        %v482 = vpop.xlane.xlu0 %481
        %v483 = vsel %vm422, %v479, -inf
        %484 = vmax.xlane.f32.xlu0 %v483
        %v485 = vpop.xlane.xlu0 %484
        %v486 = vsel %vm426, %v479, -inf
        %487 = vmax.xlane.f32.xlu0 %v486
        %v488 = vpop.xlane.xlu0 %487
        %v489 = vsel %vm430, %v479, -inf
        %490 = vmax.xlane.f32.xlu0 %v489
        %v491 = vpop.xlane.xlu0 %490
        %s492 = sld [smem:[#allocation2 + $0x9]]
        %v493 = vstv %s492
        %v494 = vmul.f32 %v493, %v249
        %v495 = vmul.f32 %v493, %v250
        %s496 = sld [smem:[#allocation2 + $0xa]]
        %v497 = vstv %s496
        %v498 = vmul.f32 %v497, %v249
        %v499 = vmul.f32 %v497, %v250
        %502 = vrot.lane.b32.xlu0 %v498, 127
        %v503 = vpop.permute.xlu0 %502
        %504 = vrot.lane.b32.xlu0 %v499, 127
        %v505 = vpop.permute.xlu0 %504
        %v508 = vadd.f32 %v494, %v503
        %v509 = vadd.f32 %v495, %v505
        %s510 = sld [smem:[#allocation2 + $0xb]]
        %v511 = vstv %s510
        %v512 = vmul.f32 %v511, %v249
        %v513 = vmul.f32 %v511, %v250
        %516 = vrot.lane.b32.xlu0 %v512, 126
        %v517 = vpop.permute.xlu0 %516
        %518 = vrot.lane.b32.xlu0 %v513, 126
        %v519 = vpop.permute.xlu0 %518
        %v522 = vadd.f32 %v508, %v517
        %v523 = vadd.f32 %v509, %v519
        %s524 = sld [smem:[#allocation2 + $0xc]]
        %v525 = vstv %s524
        %v526 = vmul.f32 %v525, %v249
        %v527 = vmul.f32 %v525, %v250
        %v528 = vmul.f32 %v525, %v251
        %v532 = vrot.slane %v526, 1
        %v533 = vrot.slane %v527, 1
        %v534 = vsel %vm292, %v532, %v533
        %v535 = vrot.slane %v528, 1
        %v536 = vsel %vm292, %v533, %v535
        %v539 = vadd.f32 %v522, %v534
        %v540 = vadd.f32 %v523, %v536
        %s541 = sld [smem:[#allocation2 + $0xd]]
        %v542 = vstv %s541
        %v543 = vmul.f32 %v542, %v249
        %v544 = vmul.f32 %v542, %v250
        %v545 = vmul.f32 %v542, %v251
        %v549 = vrot.slane %v543, 1
        %v550 = vrot.slane %v544, 1
        %v551 = vsel %vm292, %v549, %v550
        %v552 = vrot.slane %v545, 1
        %v553 = vsel %vm292, %v550, %v552
        %554 = vrot.lane.b32.xlu0 %v551, 127
        %v555 = vpop.permute.xlu0 %554
        %556 = vrot.lane.b32.xlu0 %v553, 127
        %v557 = vpop.permute.xlu0 %556
        %v560 = vadd.f32 %v539, %v555
        %v561 = vadd.f32 %v540, %v557
        %s562 = sld [smem:[#allocation2 + $0xe]]
        %v563 = vstv %s562
        %v564 = vmul.f32 %v563, %v249
        %v565 = vmul.f32 %v563, %v250
        %v566 = vmul.f32 %v563, %v251
        %v570 = vrot.slane %v564, 1
        %v571 = vrot.slane %v565, 1
        %v572 = vsel %vm292, %v570, %v571
        %v573 = vrot.slane %v566, 1
        %v574 = vsel %vm292, %v571, %v573
        %575 = vrot.lane.b32.xlu0 %v572, 126
        %v576 = vpop.permute.xlu0 %575
        %577 = vrot.lane.b32.xlu0 %v574, 126
        %v578 = vpop.permute.xlu0 %577
        %v581 = vadd.f32 %v560, %v576
        %v582 = vadd.f32 %v561, %v578
        %s583 = sld [smem:[#allocation2 + $0xf]]
        %v584 = vstv %s583
        %v585 = vmul.f32 %v584, %v249
        %v586 = vmul.f32 %v584, %v250
        %v587 = vmul.f32 %v584, %v251
        %v591 = vrot.slane %v585, 2
        %v592 = vrot.slane %v586, 2
        %v593 = vsel %vm352, %v591, %v592
        %v594 = vrot.slane %v587, 2
        %v595 = vsel %vm352, %v592, %v594
        %v598 = vadd.f32 %v581, %v593
        %v599 = vadd.f32 %v582, %v595
        %s600 = sld [smem:[#allocation2 + $0x10]]
        %v601 = vstv %s600
        %v602 = vmul.f32 %v601, %v249
        %v603 = vmul.f32 %v601, %v250
        %v604 = vmul.f32 %v601, %v251
        %v608 = vrot.slane %v602, 2
        %v609 = vrot.slane %v603, 2
        %v610 = vsel %vm352, %v608, %v609
        %v611 = vrot.slane %v604, 2
        %v612 = vsel %vm352, %v609, %v611
        %613 = vrot.lane.b32.xlu0 %v610, 127
        %v614 = vpop.permute.xlu0 %613
        %615 = vrot.lane.b32.xlu0 %v612, 127
        %v616 = vpop.permute.xlu0 %615
        %v619 = vadd.f32 %v598, %v614
        %v620 = vadd.f32 %v599, %v616
        %s621 = sld [smem:[#allocation2 + $0x11]]
        %v622 = vstv %s621
        %v623 = vmul.f32 %v622, %v249
        %v624 = vmul.f32 %v622, %v250
        %v625 = vmul.f32 %v622, %v251
        %v629 = vrot.slane %v623, 2
        %v630 = vrot.slane %v624, 2
        %v631 = vsel %vm352, %v629, %v630
        %v632 = vrot.slane %v625, 2
        %v633 = vsel %vm352, %v630, %v632
        %634 = vrot.lane.b32.xlu0 %v631, 126
        %v635 = vpop.permute.xlu0 %634
        %636 = vrot.lane.b32.xlu0 %v633, 126
        %v637 = vpop.permute.xlu0 %636
        %v640 = vadd.f32 %v619, %v635
        %v641 = vadd.f32 %v620, %v637
        %s642 = sld [smem:[#allocation5 + $0x1]]
        %v643 = vstv %s642
        %v644 = vadd.f32 %v640, %v643
        %v645 = vadd.f32 %v641, %v643
        %v646 = vmax.f32 %v644, 0.0
        %v647 = vmax.f32 %v645, 0.0
        %v648 = vsel %vm410, %v646, -inf
        %v649 = vrot.slane %v648, 4
        %v650 = vmax.f32 %v648, %v649
        %v651 = vrot.slane %v650, 2
        %v652 = vmax.f32 %v650, %v651
        %v653 = vrot.slane %v652, 1
        %v654 = vmax.f32 %v652, %v653
        %v655 = vsel %vm418, %v654, -inf
        %656 = vmax.xlane.f32.xlu0 %v655
        %v657 = vpop.xlane.xlu0 %656
        %v658 = vsel %vm422, %v654, -inf
        %659 = vmax.xlane.f32.xlu0 %v658
        %v660 = vpop.xlane.xlu0 %659
        %v661 = vsel %vm426, %v654, -inf
        %662 = vmax.xlane.f32.xlu0 %v661
        %v663 = vpop.xlane.xlu0 %662
        %v664 = vsel %vm430, %v654, -inf
        %665 = vmax.xlane.f32.xlu0 %v664
        %v666 = vpop.xlane.xlu0 %665
        %v667 = vsel %vm434, %v646, -inf
        %v668 = vrot.slane %v667, 4
        %v669 = vmax.f32 %v667, %v668
        %v670 = vrot.slane %v669, 2
        %v671 = vmax.f32 %v669, %v670
        %v672 = vrot.slane %v671, 1
        %v673 = vmax.f32 %v671, %v672
        %v674 = vsel %vm418, %v673, -inf
        %675 = vmax.xlane.f32.xlu0 %v674
        %v676 = vpop.xlane.xlu0 %675
        %v677 = vsel %vm422, %v673, -inf
        %678 = vmax.xlane.f32.xlu0 %v677
        %v679 = vpop.xlane.xlu0 %678
        %v680 = vsel %vm426, %v673, -inf
        %681 = vmax.xlane.f32.xlu0 %v680
        %v682 = vpop.xlane.xlu0 %681
        %v683 = vsel %vm430, %v673, -inf
        %684 = vmax.xlane.f32.xlu0 %v683
        %v685 = vpop.xlane.xlu0 %684
        %v686 = vsel %vm410, %v647, -inf
        %v687 = vrot.slane %v686, 4
        %v688 = vmax.f32 %v686, %v687
        %v689 = vrot.slane %v688, 2
        %v690 = vmax.f32 %v688, %v689
        %v691 = vrot.slane %v690, 1
        %v692 = vmax.f32 %v690, %v691
        %v693 = vsel %vm418, %v692, -inf
        %694 = vmax.xlane.f32.xlu0 %v693
        %v695 = vpop.xlane.xlu0 %694
        %v696 = vsel %vm422, %v692, -inf
        %697 = vmax.xlane.f32.xlu0 %v696
        %v698 = vpop.xlane.xlu0 %697
        %v699 = vsel %vm426, %v692, -inf
        %700 = vmax.xlane.f32.xlu0 %v699
        %v701 = vpop.xlane.xlu0 %700
        %v702 = vsel %vm430, %v692, -inf
        %703 = vmax.xlane.f32.xlu0 %v702
        %v704 = vpop.xlane.xlu0 %703
        %v705 = vsel %vm434, %v647, -inf
        %v706 = vrot.slane %v705, 4
        %v707 = vmax.f32 %v705, %v706
        %v708 = vrot.slane %v707, 2
        %v709 = vmax.f32 %v707, %v708
        %v710 = vrot.slane %v709, 1
        %v711 = vmax.f32 %v709, %v710
        %v712 = vsel %vm418, %v711, -inf
        %713 = vmax.xlane.f32.xlu0 %v712
        %v714 = vpop.xlane.xlu0 %713
        %v715 = vsel %vm422, %v711, -inf
        %716 = vmax.xlane.f32.xlu0 %v715
        %v717 = vpop.xlane.xlu0 %716
        %v718 = vsel %vm426, %v711, -inf
        %719 = vmax.xlane.f32.xlu0 %v718
        %v720 = vpop.xlane.xlu0 %719
        %v721 = vsel %vm430, %v711, -inf
        %722 = vmax.xlane.f32.xlu0 %v721
        %v723 = vpop.xlane.xlu0 %722
        %s724 = sld [smem:[#allocation2 + $0x12]]
        %v725 = vstv %s724
        %v726 = vmul.f32 %v725, %v249
        %v727 = vmul.f32 %v725, %v250
        %s728 = sld [smem:[#allocation2 + $0x13]]
        %v729 = vstv %s728
        %v730 = vmul.f32 %v729, %v249
        %v731 = vmul.f32 %v729, %v250
        %734 = vrot.lane.b32.xlu0 %v730, 127
        %v735 = vpop.permute.xlu0 %734
        %736 = vrot.lane.b32.xlu0 %v731, 127
        %v737 = vpop.permute.xlu0 %736
        %v740 = vadd.f32 %v726, %v735
        %v741 = vadd.f32 %v727, %v737
        %s742 = sld [smem:[#allocation2 + $0x14]]
        %v743 = vstv %s742
        %v744 = vmul.f32 %v743, %v249
        %v745 = vmul.f32 %v743, %v250
        %748 = vrot.lane.b32.xlu0 %v744, 126
        %v749 = vpop.permute.xlu0 %748
        %750 = vrot.lane.b32.xlu0 %v745, 126
        %v751 = vpop.permute.xlu0 %750
        %v754 = vadd.f32 %v740, %v749
        %v755 = vadd.f32 %v741, %v751
        %s756 = sld [smem:[#allocation2 + $0x15]]
        %v757 = vstv %s756
        %v758 = vmul.f32 %v757, %v249
        %v759 = vmul.f32 %v757, %v250
        %v760 = vmul.f32 %v757, %v251
        %v764 = vrot.slane %v758, 1
        %v765 = vrot.slane %v759, 1
        %v766 = vsel %vm292, %v764, %v765
        %v767 = vrot.slane %v760, 1
        %v768 = vsel %vm292, %v765, %v767
        %v771 = vadd.f32 %v754, %v766
        %v772 = vadd.f32 %v755, %v768
        %s773 = sld [smem:[#allocation2 + $0x16]]
        %v774 = vstv %s773
        %v775 = vmul.f32 %v774, %v249
        %v776 = vmul.f32 %v774, %v250
        %v777 = vmul.f32 %v774, %v251
        %v781 = vrot.slane %v775, 1
        %v782 = vrot.slane %v776, 1
        %v783 = vsel %vm292, %v781, %v782
        %v784 = vrot.slane %v777, 1
        %v785 = vsel %vm292, %v782, %v784
        %786 = vrot.lane.b32.xlu0 %v783, 127
        %v787 = vpop.permute.xlu0 %786
        %788 = vrot.lane.b32.xlu0 %v785, 127
        %v789 = vpop.permute.xlu0 %788
        %v792 = vadd.f32 %v771, %v787
        %v793 = vadd.f32 %v772, %v789
        %s794 = sld [smem:[#allocation2 + $0x17]]
        %v795 = vstv %s794
        %v796 = vmul.f32 %v795, %v249
        %v797 = vmul.f32 %v795, %v250
        %v798 = vmul.f32 %v795, %v251
        %v802 = vrot.slane %v796, 1
        %v803 = vrot.slane %v797, 1
        %v804 = vsel %vm292, %v802, %v803
        %v805 = vrot.slane %v798, 1
        %v806 = vsel %vm292, %v803, %v805
        %807 = vrot.lane.b32.xlu0 %v804, 126
        %v808 = vpop.permute.xlu0 %807
        %809 = vrot.lane.b32.xlu0 %v806, 126
        %v810 = vpop.permute.xlu0 %809
        %v813 = vadd.f32 %v792, %v808
        %v814 = vadd.f32 %v793, %v810
        %s815 = sld [smem:[#allocation2 + $0x18]]
        %v816 = vstv %s815
        %v817 = vmul.f32 %v816, %v249
        %v818 = vmul.f32 %v816, %v250
        %v819 = vmul.f32 %v816, %v251
        %v823 = vrot.slane %v817, 2
        %v824 = vrot.slane %v818, 2
        %v825 = vsel %vm352, %v823, %v824
        %v826 = vrot.slane %v819, 2
        %v827 = vsel %vm352, %v824, %v826
        %v830 = vadd.f32 %v813, %v825
        %v831 = vadd.f32 %v814, %v827
        %s832 = sld [smem:[#allocation2 + $0x19]]
        %v833 = vstv %s832
        %v834 = vmul.f32 %v833, %v249
        %v835 = vmul.f32 %v833, %v250
        %v836 = vmul.f32 %v833, %v251
        %v840 = vrot.slane %v834, 2
        %v841 = vrot.slane %v835, 2
        %v842 = vsel %vm352, %v840, %v841
        %v843 = vrot.slane %v836, 2
        %v844 = vsel %vm352, %v841, %v843
        %845 = vrot.lane.b32.xlu0 %v842, 127
        %v846 = vpop.permute.xlu0 %845
        %847 = vrot.lane.b32.xlu0 %v844, 127
        %v848 = vpop.permute.xlu0 %847
        %v851 = vadd.f32 %v830, %v846
        %v852 = vadd.f32 %v831, %v848
        %s853 = sld [smem:[#allocation2 + $0x1a]]
        %v854 = vstv %s853
        %v855 = vmul.f32 %v854, %v249
        %v856 = vmul.f32 %v854, %v250
        %v857 = vmul.f32 %v854, %v251
        %v861 = vrot.slane %v855, 2
        %v862 = vrot.slane %v856, 2
        %v863 = vsel %vm352, %v861, %v862
        %v864 = vrot.slane %v857, 2
        %v865 = vsel %vm352, %v862, %v864
        %866 = vrot.lane.b32.xlu0 %v863, 126
        %v867 = vpop.permute.xlu0 %866
        %868 = vrot.lane.b32.xlu0 %v865, 126
        %v869 = vpop.permute.xlu0 %868
        %v872 = vadd.f32 %v851, %v867
        %v873 = vadd.f32 %v852, %v869
        %s874 = sld [smem:[#allocation5 + $0x2]]
        %v875 = vstv %s874
        %v876 = vadd.f32 %v872, %v875
        %v877 = vadd.f32 %v873, %v875
        %v878 = vmax.f32 %v876, 0.0
        %v879 = vmax.f32 %v877, 0.0
        %v880 = vsel %vm410, %v878, -inf
        %v881 = vrot.slane %v880, 4
        %v882 = vmax.f32 %v880, %v881
        %v883 = vrot.slane %v882, 2
        %v884 = vmax.f32 %v882, %v883
        %v885 = vrot.slane %v884, 1
        %v886 = vmax.f32 %v884, %v885
        %v887 = vsel %vm418, %v886, -inf
        %888 = vmax.xlane.f32.xlu0 %v887
        %v889 = vpop.xlane.xlu0 %888
        %v890 = vsel %vm422, %v886, -inf
        %891 = vmax.xlane.f32.xlu0 %v890
        %v892 = vpop.xlane.xlu0 %891
        %v893 = vsel %vm426, %v886, -inf
        %894 = vmax.xlane.f32.xlu0 %v893
        %v895 = vpop.xlane.xlu0 %894
        %v896 = vsel %vm430, %v886, -inf
        %897 = vmax.xlane.f32.xlu0 %v896
        %v898 = vpop.xlane.xlu0 %897
        %v899 = vsel %vm434, %v878, -inf
        %v900 = vrot.slane %v899, 4
        %v901 = vmax.f32 %v899, %v900
        %v902 = vrot.slane %v901, 2
        %v903 = vmax.f32 %v901, %v902
        %v904 = vrot.slane %v903, 1
        %v905 = vmax.f32 %v903, %v904
        %v906 = vsel %vm418, %v905, -inf
        %907 = vmax.xlane.f32.xlu0 %v906
        %v908 = vpop.xlane.xlu0 %907
        %v909 = vsel %vm422, %v905, -inf
        %910 = vmax.xlane.f32.xlu0 %v909
        %v911 = vpop.xlane.xlu0 %910
        %v912 = vsel %vm426, %v905, -inf
        %913 = vmax.xlane.f32.xlu0 %v912
        %v914 = vpop.xlane.xlu0 %913
        %v915 = vsel %vm430, %v905, -inf
        %916 = vmax.xlane.f32.xlu0 %v915
        %v917 = vpop.xlane.xlu0 %916
        %v918 = vsel %vm410, %v879, -inf
        %v919 = vrot.slane %v918, 4
        %v920 = vmax.f32 %v918, %v919
        %v921 = vrot.slane %v920, 2
        %v922 = vmax.f32 %v920, %v921
        %v923 = vrot.slane %v922, 1
        %v924 = vmax.f32 %v922, %v923
        %v925 = vsel %vm418, %v924, -inf
        %926 = vmax.xlane.f32.xlu0 %v925
        %v927 = vpop.xlane.xlu0 %926
        %v928 = vsel %vm422, %v924, -inf
        %929 = vmax.xlane.f32.xlu0 %v928
        %v930 = vpop.xlane.xlu0 %929
        %v931 = vsel %vm426, %v924, -inf
        %932 = vmax.xlane.f32.xlu0 %v931
        %v933 = vpop.xlane.xlu0 %932
        %v934 = vsel %vm430, %v924, -inf
        %935 = vmax.xlane.f32.xlu0 %v934
        %v936 = vpop.xlane.xlu0 %935
        %v937 = vsel %vm434, %v879, -inf
        %v938 = vrot.slane %v937, 4
        %v939 = vmax.f32 %v937, %v938
        %v940 = vrot.slane %v939, 2
        %v941 = vmax.f32 %v939, %v940
        %v942 = vrot.slane %v941, 1
        %v943 = vmax.f32 %v941, %v942
        %v944 = vsel %vm418, %v943, -inf
        %945 = vmax.xlane.f32.xlu0 %v944
        %v946 = vpop.xlane.xlu0 %945
        %v947 = vsel %vm422, %v943, -inf
        %948 = vmax.xlane.f32.xlu0 %v947
        %v949 = vpop.xlane.xlu0 %948
        %v950 = vsel %vm426, %v943, -inf
        %951 = vmax.xlane.f32.xlu0 %v950
        %v952 = vpop.xlane.xlu0 %951
        %v953 = vsel %vm430, %v943, -inf
        %954 = vmax.xlane.f32.xlu0 %v953
        %v955 = vpop.xlane.xlu0 %954
        %s956 = sld [smem:[#allocation2 + $0x1b]]
        %v957 = vstv %s956
        %v958 = vmul.f32 %v957, %v249
        %v959 = vmul.f32 %v957, %v250
        %s960 = sld [smem:[#allocation2 + $0x1c]]
        %v961 = vstv %s960
        %v962 = vmul.f32 %v961, %v249
        %v963 = vmul.f32 %v961, %v250
        %966 = vrot.lane.b32.xlu0 %v962, 127
        %v967 = vpop.permute.xlu0 %966
        %968 = vrot.lane.b32.xlu0 %v963, 127
        %v969 = vpop.permute.xlu0 %968
        %v972 = vadd.f32 %v958, %v967
        %v973 = vadd.f32 %v959, %v969
        %s974 = sld [smem:[#allocation2 + $0x1d]]
        %v975 = vstv %s974
        %v976 = vmul.f32 %v975, %v249
        %v977 = vmul.f32 %v975, %v250
        %980 = vrot.lane.b32.xlu0 %v976, 126
        %v981 = vpop.permute.xlu0 %980
        %982 = vrot.lane.b32.xlu0 %v977, 126
        %v983 = vpop.permute.xlu0 %982
        %v986 = vadd.f32 %v972, %v981
        %v987 = vadd.f32 %v973, %v983
        %s988 = sld [smem:[#allocation2 + $0x1e]]
        %v989 = vstv %s988
        %v990 = vmul.f32 %v989, %v249
        %v991 = vmul.f32 %v989, %v250
        %v992 = vmul.f32 %v989, %v251
        %v996 = vrot.slane %v990, 1
        %v997 = vrot.slane %v991, 1
        %v998 = vsel %vm292, %v996, %v997
        %v999 = vrot.slane %v992, 1
        %v1000 = vsel %vm292, %v997, %v999
        %v1003 = vadd.f32 %v986, %v998
        %v1004 = vadd.f32 %v987, %v1000
        %s1005 = sld [smem:[#allocation2 + $0x1f]]
        %v1006 = vstv %s1005
        %v1007 = vmul.f32 %v1006, %v249
        %v1008 = vmul.f32 %v1006, %v250
        %v1009 = vmul.f32 %v1006, %v251
        %v1013 = vrot.slane %v1007, 1
        %v1014 = vrot.slane %v1008, 1
        %v1015 = vsel %vm292, %v1013, %v1014
        %v1016 = vrot.slane %v1009, 1
        %v1017 = vsel %vm292, %v1014, %v1016
        %1018 = vrot.lane.b32.xlu0 %v1015, 127
        %v1019 = vpop.permute.xlu0 %1018
        %1020 = vrot.lane.b32.xlu0 %v1017, 127
        %v1021 = vpop.permute.xlu0 %1020
        %v1024 = vadd.f32 %v1003, %v1019
        %v1025 = vadd.f32 %v1004, %v1021
        %s1026 = sld [smem:[#allocation2 + $0x20]]
        %v1027 = vstv %s1026
        %v1028 = vmul.f32 %v1027, %v249
        %v1029 = vmul.f32 %v1027, %v250
        %v1030 = vmul.f32 %v1027, %v251
        %v1034 = vrot.slane %v1028, 1
        %v1035 = vrot.slane %v1029, 1
        %v1036 = vsel %vm292, %v1034, %v1035
        %v1037 = vrot.slane %v1030, 1
        %v1038 = vsel %vm292, %v1035, %v1037
        %1039 = vrot.lane.b32.xlu0 %v1036, 126
        %v1040 = vpop.permute.xlu0 %1039
        %1041 = vrot.lane.b32.xlu0 %v1038, 126
        %v1042 = vpop.permute.xlu0 %1041
        %v1045 = vadd.f32 %v1024, %v1040
        %v1046 = vadd.f32 %v1025, %v1042
        %s1047 = sld [smem:[#allocation2 + $0x21]]
        %v1048 = vstv %s1047
        %v1049 = vmul.f32 %v1048, %v249
        %v1050 = vmul.f32 %v1048, %v250
        %v1051 = vmul.f32 %v1048, %v251
        %v1055 = vrot.slane %v1049, 2
        %v1056 = vrot.slane %v1050, 2
        %v1057 = vsel %vm352, %v1055, %v1056
        %v1058 = vrot.slane %v1051, 2
        %v1059 = vsel %vm352, %v1056, %v1058
        %v1062 = vadd.f32 %v1045, %v1057
        %v1063 = vadd.f32 %v1046, %v1059
        %s1064 = sld [smem:[#allocation2 + $0x22]]
        %v1065 = vstv %s1064
        %v1066 = vmul.f32 %v1065, %v249
        %v1067 = vmul.f32 %v1065, %v250
        %v1068 = vmul.f32 %v1065, %v251
        %v1072 = vrot.slane %v1066, 2
        %v1073 = vrot.slane %v1067, 2
        %v1074 = vsel %vm352, %v1072, %v1073
        %v1075 = vrot.slane %v1068, 2
        %v1076 = vsel %vm352, %v1073, %v1075
        %1077 = vrot.lane.b32.xlu0 %v1074, 127
        %v1078 = vpop.permute.xlu0 %1077
        %1079 = vrot.lane.b32.xlu0 %v1076, 127
        %v1080 = vpop.permute.xlu0 %1079
        %v1083 = vadd.f32 %v1062, %v1078
        %v1084 = vadd.f32 %v1063, %v1080
        %s1085 = sld [smem:[#allocation2 + $0x23]]
        %v1086 = vstv %s1085
        %v1087 = vmul.f32 %v1086, %v249
        %v1088 = vmul.f32 %v1086, %v250
        %v1089 = vmul.f32 %v1086, %v251
        %v1093 = vrot.slane %v1087, 2
        %v1094 = vrot.slane %v1088, 2
        %v1095 = vsel %vm352, %v1093, %v1094
        %v1096 = vrot.slane %v1089, 2
        %v1097 = vsel %vm352, %v1094, %v1096
        %1098 = vrot.lane.b32.xlu0 %v1095, 126
        %v1099 = vpop.permute.xlu0 %1098
        %1100 = vrot.lane.b32.xlu0 %v1097, 126
        %v1101 = vpop.permute.xlu0 %1100
        %v1104 = vadd.f32 %v1083, %v1099
        %v1105 = vadd.f32 %v1084, %v1101
        %s1106 = sld [smem:[#allocation5 + $0x3]]
        %v1107 = vstv %s1106
        %v1108 = vadd.f32 %v1104, %v1107
        %v1109 = vadd.f32 %v1105, %v1107
        %v1110 = vmax.f32 %v1108, 0.0
        %v1111 = vmax.f32 %v1109, 0.0
        %v1112 = vsel %vm410, %v1110, -inf
        %v1113 = vrot.slane %v1112, 4
        %v1114 = vmax.f32 %v1112, %v1113
        %v1115 = vrot.slane %v1114, 2
        %v1116 = vmax.f32 %v1114, %v1115
        %v1117 = vrot.slane %v1116, 1
        %v1118 = vmax.f32 %v1116, %v1117
        %v1119 = vsel %vm418, %v1118, -inf
        %1120 = vmax.xlane.f32.xlu0 %v1119
        %v1121 = vpop.xlane.xlu0 %1120
        %v1122 = vsel %vm422, %v1118, -inf
        %1123 = vmax.xlane.f32.xlu0 %v1122
        %v1124 = vpop.xlane.xlu0 %1123
        %v1125 = vsel %vm426, %v1118, -inf
        %1126 = vmax.xlane.f32.xlu0 %v1125
        %v1127 = vpop.xlane.xlu0 %1126
        %v1128 = vsel %vm430, %v1118, -inf
        %1129 = vmax.xlane.f32.xlu0 %v1128
        %v1130 = vpop.xlane.xlu0 %1129
        %v1131 = vsel %vm434, %v1110, -inf
        %v1132 = vrot.slane %v1131, 4
        %v1133 = vmax.f32 %v1131, %v1132
        %v1134 = vrot.slane %v1133, 2
        %v1135 = vmax.f32 %v1133, %v1134
        %v1136 = vrot.slane %v1135, 1
        %v1137 = vmax.f32 %v1135, %v1136
        %v1138 = vsel %vm418, %v1137, -inf
        %1139 = vmax.xlane.f32.xlu0 %v1138
        %v1140 = vpop.xlane.xlu0 %1139
        %v1141 = vsel %vm422, %v1137, -inf
        %1142 = vmax.xlane.f32.xlu0 %v1141
        %v1143 = vpop.xlane.xlu0 %1142
        %v1144 = vsel %vm426, %v1137, -inf
        %1145 = vmax.xlane.f32.xlu0 %v1144
        %v1146 = vpop.xlane.xlu0 %1145
        %v1147 = vsel %vm430, %v1137, -inf
        %1148 = vmax.xlane.f32.xlu0 %v1147
        %v1149 = vpop.xlane.xlu0 %1148
        %v1150 = vsel %vm410, %v1111, -inf
        %v1151 = vrot.slane %v1150, 4
        %v1152 = vmax.f32 %v1150, %v1151
        %v1153 = vrot.slane %v1152, 2
        %v1154 = vmax.f32 %v1152, %v1153
        %v1155 = vrot.slane %v1154, 1
        %v1156 = vmax.f32 %v1154, %v1155
        %v1157 = vsel %vm418, %v1156, -inf
        %1158 = vmax.xlane.f32.xlu0 %v1157
        %v1159 = vpop.xlane.xlu0 %1158
        %v1160 = vsel %vm422, %v1156, -inf
        %1161 = vmax.xlane.f32.xlu0 %v1160
        %v1162 = vpop.xlane.xlu0 %1161
        %v1163 = vsel %vm426, %v1156, -inf
        %1164 = vmax.xlane.f32.xlu0 %v1163
        %v1165 = vpop.xlane.xlu0 %1164
        %v1166 = vsel %vm430, %v1156, -inf
        %1167 = vmax.xlane.f32.xlu0 %v1166
        %v1168 = vpop.xlane.xlu0 %1167
        %v1169 = vsel %vm434, %v1111, -inf
        %v1170 = vrot.slane %v1169, 4
        %v1171 = vmax.f32 %v1169, %v1170
        %v1172 = vrot.slane %v1171, 2
        %v1173 = vmax.f32 %v1171, %v1172
        %v1174 = vrot.slane %v1173, 1
        %v1175 = vmax.f32 %v1173, %v1174
        %v1176 = vsel %vm418, %v1175, -inf
        %1177 = vmax.xlane.f32.xlu0 %v1176
        %v1178 = vpop.xlane.xlu0 %1177
        %v1179 = vsel %vm422, %v1175, -inf
        %1180 = vmax.xlane.f32.xlu0 %v1179
        %v1181 = vpop.xlane.xlu0 %1180
        %v1182 = vsel %vm426, %v1175, -inf
        %1183 = vmax.xlane.f32.xlu0 %v1182
        %v1184 = vpop.xlane.xlu0 %1183
        %v1185 = vsel %vm430, %v1175, -inf
        %1186 = vmax.xlane.f32.xlu0 %v1185
        %v1187 = vpop.xlane.xlu0 %1186
        %vm1188 = vcmask 7168
        %v1189 = vsel %vm1188, %v421, %v425
        %vm1190 = vcmask 15360
        %v1191 = vsel %vm1190, %v1189, %v429
        %vm1192 = vcmask 23552
        %v1193 = vsel %vm1192, %v1191, %v433
        %v1194 = vsel %vm418, %v1193, %v444
        %vm1195 = vcmask 39936
        %v1196 = vsel %vm1195, %v1194, %v447
        %vm1197 = vcmask 48128
        %v1198 = vsel %vm1197, %v1196, %v450
        %vm1199 = vcmask 56320
        %v1200 = vsel %vm1199, %v1198, %v453
        %vm1201 = vcmask 64512
        %v1202 = vsel %vm1201, %v1200, %v463
        %vm1203 = vcmask 72704
        %v1204 = vsel %vm1203, %v1202, %v466
        %vm1205 = vcmask 80896
        %v1206 = vsel %vm1205, %v1204, %v469
        %vm1207 = vcmask 89088
        %v1208 = vsel %vm1207, %v1206, %v472
        %vm1209 = vcmask 97280
        %v1210 = vsel %vm1209, %v1208, %v482
        %vm1211 = vcmask 105472
        %v1212 = vsel %vm1211, %v1210, %v485
        %vm1213 = vcmask 113664
        %v1214 = vsel %vm1213, %v1212, %v488
        %vm1215 = vcmask 121856
        %v1216 = vsel %vm1215, %v1214, %v491
        %v1217 = vsel %vm1188, %v657, %v660
        %v1218 = vsel %vm1190, %v1217, %v663
        %v1219 = vsel %vm1192, %v1218, %v666
        %v1220 = vsel %vm418, %v1219, %v676
        %v1221 = vsel %vm1195, %v1220, %v679
        %v1222 = vsel %vm1197, %v1221, %v682
        %v1223 = vsel %vm1199, %v1222, %v685
        %v1224 = vsel %vm1201, %v1223, %v695
        %v1225 = vsel %vm1203, %v1224, %v698
        %v1226 = vsel %vm1205, %v1225, %v701
        %v1227 = vsel %vm1207, %v1226, %v704
        %v1228 = vsel %vm1209, %v1227, %v714
        %v1229 = vsel %vm1211, %v1228, %v717
        %v1230 = vsel %vm1213, %v1229, %v720
        %v1231 = vsel %vm1215, %v1230, %v723
        %v1232 = vsel %vm1188, %v889, %v892
        %v1233 = vsel %vm1190, %v1232, %v895
        %v1234 = vsel %vm1192, %v1233, %v898
        %v1235 = vsel %vm418, %v1234, %v908
        %v1236 = vsel %vm1195, %v1235, %v911
        %v1237 = vsel %vm1197, %v1236, %v914
        %v1238 = vsel %vm1199, %v1237, %v917
        %v1239 = vsel %vm1201, %v1238, %v927
        %v1240 = vsel %vm1203, %v1239, %v930
        %v1241 = vsel %vm1205, %v1240, %v933
        %v1242 = vsel %vm1207, %v1241, %v936
        %v1243 = vsel %vm1209, %v1242, %v946
        %v1244 = vsel %vm1211, %v1243, %v949
        %v1245 = vsel %vm1213, %v1244, %v952
        %v1246 = vsel %vm1215, %v1245, %v955
        %v1247 = vsel %vm1188, %v1121, %v1124
        %v1248 = vsel %vm1190, %v1247, %v1127
        %v1249 = vsel %vm1192, %v1248, %v1130
        %v1250 = vsel %vm418, %v1249, %v1140
        %v1251 = vsel %vm1195, %v1250, %v1143
        %v1252 = vsel %vm1197, %v1251, %v1146
        %v1253 = vsel %vm1199, %v1252, %v1149
        %v1254 = vsel %vm1201, %v1253, %v1159
        %v1255 = vsel %vm1203, %v1254, %v1162
        %v1256 = vsel %vm1205, %v1255, %v1165
        %v1257 = vsel %vm1207, %v1256, %v1168
        %v1258 = vsel %vm1209, %v1257, %v1178
        %v1259 = vsel %vm1211, %v1258, %v1181
        %v1260 = vsel %vm1213, %v1259, %v1184
        %v1261 = vsel %vm1215, %v1260, %v1187
        %1263 = vrot.lane.b32.xlu0 %v1231, 16
        %v1264 = vpop.permute.xlu0 %1263
        %1267 = vrot.lane.b32.xlu0 %v1246, 32
        %v1268 = vpop.permute.xlu0 %1267
        %1271 = vrot.lane.b32.xlu0 %v1261, 48
        %v1272 = vpop.permute.xlu0 %1271
        %vm1274 = vcmask 130048
        %v1275 = vsel %vm1274, %v1216, %v1264
        %vm1276 = vcmask 261120
        %v1277 = vsel %vm1276, %v1275, %v1268
        %vm1278 = vcmask 392192
        %v1279 = vsel %vm1278, %v1277, %v1272
        %v1280 = vld [vmem:[%s3] sm:$0xff]
        %v1281 = vld [vmem:[%s3 + $0x8] sm:$0xff]
        %v1282 = vld [vmem:[%s3 + $0x10] sm:$0xff]
        %v1283 = vld [vmem:[%s3 + $0x18] sm:$0xff]
        %v1284 = vld [vmem:[%s3 + $0x20] sm:$0xff]
        %v1285 = vld [vmem:[%s3 + $0x28] sm:$0xff]
        %v1286 = vld [vmem:[%s3 + $0x30] sm:$0xff]
        %v1287 = vld [vmem:[%s3 + $0x38] sm:$0xff]
        %v1288 = vld [vmem:[%s4] sm:$0x1]
        %vm1289 = vcmask 523264
        %v1291 = vsel %vm1289, %v1279, 0
        %1293 = vmatpush.msra.mxu0 0.0
        %1294 = vmatpush.msra.mxu0 0.0
        %1295 = vmatpush.msra.mxu0 0.0
        %1296 = vmatpush.msra.mxu0 0.0
        %1297 = vmatpush.msra.mxu0 0.0
        %1298 = vmatpush.msra.mxu0 0.0
        %1299 = vmatpush.msra.mxu0 0.0
        %1300 = vmatpush.msra.mxu0 0.0
        %1301 = vmatpush.msra.mxu0 %v1287
        %1302 = vmatpush.msra.mxu0 %v1286
        %1303 = vmatpush.msra.mxu0 %v1285
        %1304 = vmatpush.msra.mxu0 %v1284
        %1305 = vmatpush.msra.mxu0 %v1283
        %1306 = vmatpush.msra.mxu0 %v1282
        %1307 = vmatpush.msra.mxu0 %v1281
        %1308 = vmatpush.msra.mxu0 %v1280
        %1309 = vmatmul.f32.gmra.mxu0 %v1291
        %v1310 = vpop.f32.mrf.mxu0
        %v1311 = vadd.f32 %v1288, %v1310
        %1312 = vdwg.mxu0
        %1313 = vst [vmem:[%s243] sm:$0x1] %v1311
        %s1314 = sand.u32 %s139, 1
        %s1315 = scalar_lea.sflag [#allocation3], %s1314
        %s1316 = sand.u32 %s139, 1
        %s1317 = scalar_lea.vmem [#allocation7], %s1316
        // Predicated region
        $region49: #{tpu_custom_call.1} parent=39 // pred_check
          %p1318 = pneg %p149
        $region50: #{tpu_custom_call.1} parent=39 // pred_check_branch
          %1320 = sbr.rel (%p1318) target = $region52
        $region51: #{tpu_custom_call.1} parent=39 // pred_region
          %1322 = vsyncadd %s1315, 0
          %s1323 = scalar_lea.hbm %s5, %s21
          %s1325 = sshll.u32 %s1317, 4
          %s1326 = int_to_ptr.vmem [resolvable:$true] %s1325
          %s1327 = sshll.u32 %s1323, 4
          %s1328 = int_to_ptr.hbm [resolvable:$true] %s1327
          %1330 = dma.vmem_to_hbm [thread:$0]  %s1326, 16, %s1328, %s1315
        $region52: #{tpu_custom_call.1} parent=39 // pred_fallthru
          _
      $region40: #{tpu_custom_call.1} parent=5 // pred_fallthru
        _
      %p1331 = scmp.le.s32.totalorder 2, %s16
      // Predicated region
      $region53: #{tpu_custom_call.1} parent=5 // pred_check
        %p1332 = pneg %p1331
      $region54: #{tpu_custom_call.1} parent=5 // pred_check_branch
        %1334 = sbr.rel (%p1332) target = $region56
      $region55: #{tpu_custom_call.1} parent=5 // pred_region
        %s1335 = ssub.s32 %s16, 2
        // Predicated region
        $region57: #{tpu_custom_call.1} parent=55 // pred_check
          %p1336 = pneg %p155
        $region58: #{tpu_custom_call.1} parent=55 // pred_check_branch
          %1338 = sbr.rel (%p1336) target = $region60
        $region59: #{tpu_custom_call.1} parent=55 // pred_region
          %s1339 = sand.u32 %s140, 1
          %s1340 = scalar_lea.sflag [#allocation3], %s1339
          %s1341 = sand.u32 %s140, 1
          %s1342 = scalar_lea.vmem [#allocation7], %s1341
          %1344 = dma.done %s1340, 16
        $region60: #{tpu_custom_call.1} parent=55 // pred_fallthru
          _
      $region56: #{tpu_custom_call.1} parent=5 // pred_fallthru
        _
    $region6: #{tpu_custom_call.1} parent=1 // loop_footer
      %s20 = sadd.s32 1, %s16
    $region7: #{tpu_custom_call.1} parent=1 // loop_footer_branch
      %15 = sbr.rel target = $region3
    $region8: #{tpu_custom_call.1} parent=1 // loop_exit
      _
    %1345 = vsyncpa [#allocation3], 1
    %s1346 = scalar_lea.sflag [#allocation3], 1
    %1347 = vsyncpa %s1346, 1
    %1348 = vsyncpa [#allocation4], 1
    %s1349 = scalar_lea.sflag [#allocation4], 1
    %1350 = vsyncpa %s1349, 1
    %1351 = vsyncpa [#allocation6], 1

</llo_original>
